<compile_context>
chip_gen: v7x
topology: tpu7x:2x2x1
jax: 0.10.0
libtpu: 0.0.40
codegen_flags: <defaults>
</compile_context>

<pallas_src>
import functools
import math

import jax
import jax.numpy as jnp
from jax.experimental import pallas as pl
from jax.experimental.pallas import tpu as pltpu


# ----------------------------------------------------------------------------
# Kernel
# ----------------------------------------------------------------------------
def _layer_norm(x, gamma, beta, eps=1e-5):
    mu = jnp.mean(x, axis=-1, keepdims=True)
    var = jnp.mean((x - mu) ** 2, axis=-1, keepdims=True)
    return (x - mu) * jax.lax.rsqrt(var + eps) * gamma + beta


def _encoder_stack_kernel(x0_ref, mask_ref,
                          wqkv_ref, bqkv_ref, wo_ref,
                          w1_ref, b1_ref, w2_ref, vecs_ref,
                          o_ref, *, num_heads, weights_resident):
    l = pl.program_id(1)

    # Seed the VMEM-resident activation carry at the first layer step.
    @pl.when(l == 0)
    def _():
        o_ref[...] = x0_ref[...]

    x = o_ref[...]                            # (Bblk, S, D) f32 carry
    Bblk, S, D = x.shape
    H = num_heads
    dh = D // H
    M = Bblk * S

    # Weight selection: layer-resident blocks are indexed dynamically by l;
    # per-layer streamed blocks always hold exactly the current layer at 0.
    wsel = l if weights_resident else 0
    wqkv = wqkv_ref[wsel]                     # (D, 3D)  bf16 (Q cols pre-scaled)
    bqkv = bqkv_ref[wsel]                     # (1, 3D)  f32
    wo = wo_ref[wsel]                         # (D, D)   bf16
    w1 = w1_ref[wsel]                         # (D, F)   bf16
    b1 = b1_ref[wsel]                         # (1, F)   f32
    w2 = w2_ref[wsel]                         # (F, D)   bf16
    vecs = vecs_ref[wsel]                     # (6, D)   f32
    bo, g1, be1, b2, g2, be2 = (vecs[i:i + 1] for i in range(6))

    x2 = x.reshape(M, D)                      # flatten batch block for matmuls
    x_bf = x2.astype(jnp.bfloat16)

    # ---- fused QKV projection (one MXU matmul over Bblk*S rows) -------------
    qkv = jnp.dot(x_bf, wqkv, preferred_element_type=jnp.float32) + bqkv   # (M,3D)
    q3 = qkv[:, :D].reshape(Bblk, S, D).astype(jnp.bfloat16)
    k3 = qkv[:, D:2 * D].reshape(Bblk, S, D).astype(jnp.bfloat16)
    v3 = qkv[:, 2 * D:].reshape(Bblk, S, D).astype(jnp.bfloat16)

    neg = mask_ref[...]                       # (Bblk, 1, S) additive key mask

    # ---- attention: heads as lane slices; WO fused per head (no concat) -----
    attn = jnp.zeros((M, D), jnp.float32)
    for h in range(H):
        lo = h * dh
        qh = q3[:, :, lo:lo + dh]             # (Bblk, S, dh)
        kh = k3[:, :, lo:lo + dh]
        vh = v3[:, :, lo:lo + dh]

        s = jnp.einsum('bqd,bkd->bqk', qh, kh,
                       preferred_element_type=jnp.float32)       # (Bblk,S,S)
        s = s + neg
        s = s - jnp.max(s, axis=-1, keepdims=True)
        p = jnp.exp(s)
        p = (p * pl.reciprocal(jnp.sum(p, axis=-1, keepdims=True),
                               approx=True)).astype(jnp.bfloat16)

        ctx = jnp.einsum('bqk,bkd->bqd', p, vh,
                         preferred_element_type=jnp.float32)     # (Bblk,S,dh)
        attn = attn + jnp.dot(ctx.reshape(M, dh).astype(jnp.bfloat16),
                              wo[lo:lo + dh, :],
                              preferred_element_type=jnp.float32)
    attn = attn + bo

    # dropout layers are identity at inference
    y = _layer_norm(x2 + attn, g1, be1)

    # ---- feed-forward ---------------------------------------------------------
    h1 = jnp.dot(y.astype(jnp.bfloat16), w1,
                 preferred_element_type=jnp.float32) + b1
    h1 = jnp.maximum(h1, 0.0).astype(jnp.bfloat16)   # f32 (M,F) hidden dies here
    ff = jnp.dot(h1, w2, preferred_element_type=jnp.float32) + b2

    o_ref[...] = _layer_norm(y + ff, g2, be2).reshape(Bblk, S, D)


# ----------------------------------------------------------------------------
# Wrapper
# ----------------------------------------------------------------------------
def _vmem_limit_bytes():
    """Per-generation VMEM request: physical capacity minus compiler headroom."""
    try:
        cap = int(pltpu.get_tpu_info().vmem_capacity_bytes)
    except Exception:
        cap = 128 * 1024 * 1024
    return max(cap - 16 * 1024 * 1024, 32 * 1024 * 1024)


def _pick_block_batch(B, S, target_rows=256):
    """Largest batch block whose row tile stays near the MXU-friendly target,
    preferring >=2 grid blocks so a 'parallel' axis can feed 2 cores (v7x)."""
    divs = [d for d in range(1, B + 1) if B % d == 0]
    cands = [d for d in divs if d * S <= max(target_rows, S)] or [1]
    bblk = max(cands)
    if B // bblk < 2:
        smaller = [d for d in divs if B // d >= 2 and d * S <= max(target_rows, S)]
        if smaller:
            bblk = max(smaller)
    return bblk


def encoder_forward(tokens, mask, emb_table, pe, params, num_heads,
                    block_batch=None):
    """tokens: (B,S) int32; mask: (B,1,S) f32 (1=attend, 0=padded key)."""
    B, S = tokens.shape
    D = emb_table.shape[1]
    L, _, F = params['w1'].shape
    H = num_heads
    dh = D // H

    # ---- plain-JAX prologue ---------------------------------------------------
    # TODO(synk): per-token embedding gather stays in plain JAX; folding it into
    # the kernel would need PrefetchScalarGridSpec + pl.Element row indexing.
    x0 = emb_table[tokens] * jnp.float32(math.sqrt(D)) + pe[:S][None, :, :]
    addmask = (1.0 - mask) * jnp.float32(-1e9)          # (B,1,S) additive mask

    # Fold 1/sqrt(dh) attention scale into the Q columns (zero runtime cost),
    # cast matmul weights to bf16 once at the call boundary.
    colscale = jnp.concatenate(
        [jnp.full((D,), 1.0 / math.sqrt(dh), jnp.float32),
         jnp.ones((2 * D,), jnp.float32)])
    wqkv = (params['wqkv'] * colscale).astype(jnp.bfloat16)
    bqkv = params['bqkv'] * colscale
    wo = params['wo'].astype(jnp.bfloat16)
    w1 = params['w1'].astype(jnp.bfloat16)
    b1 = params['b1']
    w2 = params['w2'].astype(jnp.bfloat16)
    vecs = params['vecs']

    # ---- tiling decisions -------------------------------------------------------
    Bblk = block_batch if block_batch else _pick_block_batch(B, S)
    vmem_limit = _vmem_limit_bytes()
    weight_bytes = L * (2 * (D * 3 * D + D * D + D * F + F * D)
                        + 4 * (3 * D + F + 6 * D))
    # Layer-resident weights only when the (double-buffered) stack fits a
    # conservative slice of the per-generation VMEM budget (v5e/v6e usually yes,
    # v7x at 64 MiB usually no for large models).
    weights_resident = 2 * weight_bytes <= int(0.4 * vmem_limit)
    lw = L if weights_resident else 1
    w_map = ((lambda b, l: (0, 0, 0)) if weights_resident
             else (lambda b, l: (l, 0, 0)))
    b_map = lambda b, l: (b, 0, 0)

    kernel = functools.partial(_encoder_stack_kernel, num_heads=H,
                               weights_resident=weights_resident)

    return pl.pallas_call(
        kernel,
        out_shape=jax.ShapeDtypeStruct((B, S, D), jnp.float32),
        grid=(B // Bblk, L),
        in_specs=[
            pl.BlockSpec((Bblk, S, D), b_map),            # x0 (carry seed)
            pl.BlockSpec((Bblk, 1, S), b_map),            # additive key mask
            pl.BlockSpec((lw, D, 3 * D), w_map),          # wqkv (bf16)
            pl.BlockSpec((lw, 1, 3 * D), w_map),          # bqkv (f32)
            pl.BlockSpec((lw, D, D), w_map),              # wo   (bf16)
            pl.BlockSpec((lw, D, F), w_map),              # w1   (bf16)
            pl.BlockSpec((lw, 1, F), w_map),              # b1   (f32)
            pl.BlockSpec((lw, F, D), w_map),              # w2   (bf16)
            pl.BlockSpec((lw, 6, D), w_map),              # packed LN/bias vecs
        ],
        out_specs=pl.BlockSpec((Bblk, S, D), b_map),
        input_output_aliases={0: 0},                      # x0 buffer reused as out
        compiler_params=pltpu.CompilerParams(
            dimension_semantics=("parallel", "arbitrary"),
            vmem_limit_bytes=vmem_limit),
    )(x0, addmask, wqkv, bqkv, wo, w1, b1, w2, vecs)


# ----------------------------------------------------------------------------
# Parameter init / positional encoding (plain JAX glue)
# ----------------------------------------------------------------------------
def sinusoidal_pos_encoding(max_len, d_model):
    pos = jnp.arange(max_len, dtype=jnp.float32)[:, None]
    i = jnp.arange(d_model, dtype=jnp.float32)[None, :]
    angle_rates = 1.0 / jnp.power(10000.0, (2.0 * jnp.floor(i / 2.0)) / d_model)
    angles = pos * angle_rates
    even = (jnp.arange(d_model)[None, :] % 2) == 0
    return jnp.where(even, jnp.sin(angles), jnp.cos(angles)).astype(jnp.float32)


def init_params(key, num_layers, d_model, d_ff, vocab_size):
    keys = jax.random.split(key, 1 + num_layers)
    emb = jax.random.normal(keys[0], (vocab_size, d_model), jnp.float32) * 0.02

    def lin(k, din, dout):
        return jax.random.normal(k, (din, dout), jnp.float32) / math.sqrt(din)

    wqkv, bqkv, wo, w1, b1, w2, vecs = ([] for _ in range(7))
    for i in range(num_layers):
        ks = jax.random.split(keys[1 + i], 6)
        wq = lin(ks[0], d_model, d_model)
        wk = lin(ks[1], d_model, d_model)
        wv = lin(ks[2], d_model, d_model)
        wqkv.append(jnp.concatenate([wq, wk, wv], axis=1))        # (D, 3D)
        bqkv.append(jnp.zeros((1, 3 * d_model), jnp.float32))
        wo.append(lin(ks[3], d_model, d_model))
        w1.append(lin(ks[4], d_model, d_ff))
        b1.append(jnp.zeros((1, d_ff), jnp.float32))
        w2.append(lin(ks[5], d_ff, d_model))
        vecs.append(jnp.stack([
            jnp.zeros((d_model,), jnp.float32),    # bo
            jnp.ones((d_model,), jnp.float32),     # gamma1
            jnp.zeros((d_model,), jnp.float32),    # beta1
            jnp.zeros((d_model,), jnp.float32),    # b2
            jnp.ones((d_model,), jnp.float32),     # gamma2
            jnp.zeros((d_model,), jnp.float32),    # beta2
        ], axis=0))                                # (6, D)

    params = dict(
        wqkv=jnp.stack(wqkv), bqkv=jnp.stack(bqkv), wo=jnp.stack(wo),
        w1=jnp.stack(w1), b1=jnp.stack(b1), w2=jnp.stack(w2),
        vecs=jnp.stack(vecs))                      # all f32; cast in wrapper
    return emb, params


# ----------------------------------------------------------------------------
if __name__ == "__main__":
    num_layers = 2
    d_model = 128        # lane-friendly (multiple of 128)
    num_heads = 4        # d_head = 32
    d_ff = 256
    vocab_size = 64
    max_seq_len = 16
    B, S = 4, 8

    key = jax.random.PRNGKey(0)
    k_tok, k_par = jax.random.split(key)

    tokens = jax.random.randint(k_tok, (B, S), 0, vocab_size, dtype=jnp.int32)
    # key-padding mask: sequences 1 and 3 have trailing padded keys
    mask = jnp.ones((B, 1, S), jnp.float32)
    mask = mask.at[1, 0, S - 2:].set(0.0)
    mask = mask.at[3, 0, S - 3:].set(0.0)

    emb_table, params = init_params(k_par, num_layers, d_model, d_ff, vocab_size)
    pe = sinusoidal_pos_encoding(max_seq_len, d_model)

    out = encoder_forward(tokens, mask, emb_table, pe, params, num_heads)
    out = jax.block_until_ready(out)

    assert out.shape == (B, S, d_model) and out.dtype == jnp.float32
    assert bool(jnp.all(jnp.isfinite(out)))
    print("KERNEL_OK")
</pallas_src>

<mosaic_0001>
module attributes {stable_mosaic.version = 11 : i64} {
  func.func @_encoder_stack_kernel(%arg0: i32, %arg1: i32, %arg2: memref<2x8x128xf32, #tpu.memory_space<vmem>>, %arg3: memref<2x1x8xf32, #tpu.memory_space<vmem>>, %arg4: memref<2x128x384xbf16, #tpu.memory_space<vmem>>, %arg5: memref<2x1x384xf32, #tpu.memory_space<vmem>>, %arg6: memref<2x128x128xbf16, #tpu.memory_space<vmem>>, %arg7: memref<2x128x256xbf16, #tpu.memory_space<vmem>>, %arg8: memref<2x1x256xf32, #tpu.memory_space<vmem>>, %arg9: memref<2x256x128xbf16, #tpu.memory_space<vmem>>, %arg10: memref<2x6x128xf32, #tpu.memory_space<vmem>>, %arg11: memref<2x8x128xf32, #tpu.memory_space<vmem>>) attributes {dimension_semantics = [#tpu.dimension_semantics<parallel>, #tpu.dimension_semantics<arbitrary>], iteration_bounds = array<i64: 2, 2>, scalar_prefetch = 0 : i64, scratch_operands = 0 : i64, tpu.core_type = #tpu.core_type<tc>, window_params = [{transform_indices = @transform_0, window_bounds = array<i64: 2, 8, 128>}, {transform_indices = @transform_1, window_bounds = array<i64: 2, 1, 8>}, {pipeline_mode = #tpu.pipeline_mode<synchronous>, transform_indices = @transform_2, window_bounds = array<i64: 2, 128, 384>}, {pipeline_mode = #tpu.pipeline_mode<synchronous>, transform_indices = @transform_3, window_bounds = array<i64: 2, 1, 384>}, {pipeline_mode = #tpu.pipeline_mode<synchronous>, transform_indices = @transform_4, window_bounds = array<i64: 2, 128, 128>}, {pipeline_mode = #tpu.pipeline_mode<synchronous>, transform_indices = @transform_5, window_bounds = array<i64: 2, 128, 256>}, {pipeline_mode = #tpu.pipeline_mode<synchronous>, transform_indices = @transform_6, window_bounds = array<i64: 2, 1, 256>}, {pipeline_mode = #tpu.pipeline_mode<synchronous>, transform_indices = @transform_7, window_bounds = array<i64: 2, 256, 128>}, {pipeline_mode = #tpu.pipeline_mode<synchronous>, transform_indices = @transform_8, window_bounds = array<i64: 2, 6, 128>}, {transform_indices = @transform_9, window_bounds = array<i64: 2, 8, 128>}]} {
    %c0_i32 = arith.constant 0 : i32
    %0 = arith.cmpi eq, %arg1, %c0_i32 : i32
    %1 = arith.extui %0 : i1 to i32
    %c0_i32_0 = arith.constant 0 : i32
    %2 = arith.cmpi ne, %1, %c0_i32_0 : i32
    scf.if %2 {
      %c0_57 = arith.constant 0 : index
      %c0_58 = arith.constant 0 : index
      %c0_59 = arith.constant 0 : index
      %199 = vector.load %arg2[%c0_57, %c0_58, %c0_59] : memref<2x8x128xf32, #tpu.memory_space<vmem>>, vector<2x8x128xf32>
      %c0_60 = arith.constant 0 : index
      %c0_61 = arith.constant 0 : index
      %c0_62 = arith.constant 0 : index
      %200 = vector.load %arg11[%c0_60, %c0_61, %c0_62] : memref<2x8x128xf32, #tpu.memory_space<vmem>>, vector<2x8x128xf32>
      tpu.vector_store %arg11[%c0_60, %c0_61, %c0_62], %199 {strides = array<i32>} : memref<2x8x128xf32, #tpu.memory_space<vmem>>, vector<2x8x128xf32>,
    } else {
    }
    %c0 = arith.constant 0 : index
    %c0_1 = arith.constant 0 : index
    %c0_2 = arith.constant 0 : index
    %3 = vector.load %arg11[%c0, %c0_1, %c0_2] : memref<2x8x128xf32, #tpu.memory_space<vmem>>, vector<2x8x128xf32>
    %4 = arith.index_cast %arg1 : i32 to index
    %c0_3 = arith.constant 0 : index
    %c0_4 = arith.constant 0 : index
    %5 = vector.load %arg4[%4, %c0_3, %c0_4] : memref<2x128x384xbf16, #tpu.memory_space<vmem>>, vector<1x128x384xbf16>
    %6 = vector.shape_cast %5 : vector<1x128x384xbf16> to vector<128x384xbf16>
    %7 = arith.index_cast %arg1 : i32 to index
    %c0_5 = arith.constant 0 : index
    %c0_6 = arith.constant 0 : index
    %8 = vector.load %arg5[%7, %c0_5, %c0_6] : memref<2x1x384xf32, #tpu.memory_space<vmem>>, vector<1x1x384xf32>
    %9 = vector.shape_cast %8 : vector<1x1x384xf32> to vector<1x384xf32>
    %10 = arith.index_cast %arg1 : i32 to index
    %c0_7 = arith.constant 0 : index
    %c0_8 = arith.constant 0 : index
    %11 = vector.load %arg6[%10, %c0_7, %c0_8] : memref<2x128x128xbf16, #tpu.memory_space<vmem>>, vector<1x128x128xbf16>
    %12 = vector.shape_cast %11 : vector<1x128x128xbf16> to vector<128x128xbf16>
    %13 = arith.index_cast %arg1 : i32 to index
    %c0_9 = arith.constant 0 : index
    %c0_10 = arith.constant 0 : index
    %14 = vector.load %arg7[%13, %c0_9, %c0_10] : memref<2x128x256xbf16, #tpu.memory_space<vmem>>, vector<1x128x256xbf16>
    %15 = vector.shape_cast %14 : vector<1x128x256xbf16> to vector<128x256xbf16>
    %16 = arith.index_cast %arg1 : i32 to index
    %c0_11 = arith.constant 0 : index
    %c0_12 = arith.constant 0 : index
    %17 = vector.load %arg8[%16, %c0_11, %c0_12] : memref<2x1x256xf32, #tpu.memory_space<vmem>>, vector<1x1x256xf32>
    %18 = vector.shape_cast %17 : vector<1x1x256xf32> to vector<1x256xf32>
    %19 = arith.index_cast %arg1 : i32 to index
    %c0_13 = arith.constant 0 : index
    %c0_14 = arith.constant 0 : index
    %20 = vector.load %arg9[%19, %c0_13, %c0_14] : memref<2x256x128xbf16, #tpu.memory_space<vmem>>, vector<1x256x128xbf16>
    %21 = vector.shape_cast %20 : vector<1x256x128xbf16> to vector<256x128xbf16>
    %22 = arith.index_cast %arg1 : i32 to index
    %c0_15 = arith.constant 0 : index
    %c0_16 = arith.constant 0 : index
    %23 = vector.load %arg10[%22, %c0_15, %c0_16] : memref<2x6x128xf32, #tpu.memory_space<vmem>>, vector<1x6x128xf32>
    %24 = vector.shape_cast %23 : vector<1x6x128xf32> to vector<6x128xf32>
    %25 = vector.extract_strided_slice %24 {offsets = [0, 0], sizes = [1, 128], strides = [1, 1]} : vector<6x128xf32> to vector<1x128xf32>
    %26 = vector.extract_strided_slice %24 {offsets = [1, 0], sizes = [1, 128], strides = [1, 1]} : vector<6x128xf32> to vector<1x128xf32>
    %27 = vector.extract_strided_slice %24 {offsets = [2, 0], sizes = [1, 128], strides = [1, 1]} : vector<6x128xf32> to vector<1x128xf32>
    %28 = vector.extract_strided_slice %24 {offsets = [3, 0], sizes = [1, 128], strides = [1, 1]} : vector<6x128xf32> to vector<1x128xf32>
    %29 = vector.extract_strided_slice %24 {offsets = [4, 0], sizes = [1, 128], strides = [1, 1]} : vector<6x128xf32> to vector<1x128xf32>
    %30 = vector.extract_strided_slice %24 {offsets = [5, 0], sizes = [1, 128], strides = [1, 1]} : vector<6x128xf32> to vector<1x128xf32>
    %31 = vector.shape_cast %3 : vector<2x8x128xf32> to vector<16x128xf32>
    %32 = arith.truncf %31 : vector<16x128xf32> to vector<16x128xbf16>
    %cst = arith.constant dense<0.000000e+00> : vector<16x384xf32>
    %33 = tpu.matmul %32, %6, %cst {dimension_numbers = #tpu.dot_dimension_numbers<[1], [0], [0], [1], [0, 0, 1, 1], [], []>} : vector<16x128xbf16>, vector<128x384xbf16>, vector<16x384xf32> -> vector<16x384xf32>
    %34 = vector.broadcast %9 : vector<1x384xf32> to vector<16x384xf32>
    %35 = arith.addf %33, %34 : vector<16x384xf32>
    %36 = vector.extract_strided_slice %35 {offsets = [0, 0], sizes = [16, 128], strides = [1, 1]} : vector<16x384xf32> to vector<16x128xf32>
    %37 = vector.shape_cast %36 : vector<16x128xf32> to vector<2x8x128xf32>
    %38 = arith.truncf %37 : vector<2x8x128xf32> to vector<2x8x128xbf16>
    %39 = vector.extract_strided_slice %35 {offsets = [0, 128], sizes = [16, 128], strides = [1, 1]} : vector<16x384xf32> to vector<16x128xf32>
    %40 = vector.shape_cast %39 : vector<16x128xf32> to vector<2x8x128xf32>
    %41 = arith.truncf %40 : vector<2x8x128xf32> to vector<2x8x128xbf16>
    %42 = vector.extract_strided_slice %35 {offsets = [0, 256], sizes = [16, 128], strides = [1, 1]} : vector<16x384xf32> to vector<16x128xf32>
    %43 = vector.shape_cast %42 : vector<16x128xf32> to vector<2x8x128xf32>
    %44 = arith.truncf %43 : vector<2x8x128xf32> to vector<2x8x128xbf16>
    %c0_17 = arith.constant 0 : index
    %c0_18 = arith.constant 0 : index
    %c0_19 = arith.constant 0 : index
    %45 = vector.load %arg3[%c0_17, %c0_18, %c0_19] : memref<2x1x8xf32, #tpu.memory_space<vmem>>, vector<2x1x8xf32>
    %cst_20 = arith.constant 0.000000e+00 : f32
    %46 = vector.broadcast %cst_20 : f32 to vector<16x128xf32>
    %47 = vector.extract_strided_slice %38 {offsets = [0, 0, 0], sizes = [2, 8, 32], strides = [1, 1, 1]} : vector<2x8x128xbf16> to vector<2x8x32xbf16>
    %48 = vector.extract_strided_slice %41 {offsets = [0, 0, 0], sizes = [2, 8, 32], strides = [1, 1, 1]} : vector<2x8x128xbf16> to vector<2x8x32xbf16>
    %49 = vector.extract_strided_slice %44 {offsets = [0, 0, 0], sizes = [2, 8, 32], strides = [1, 1, 1]} : vector<2x8x128xbf16> to vector<2x8x32xbf16>
    "tpu.trace_start"() <{level = 10 : i32, message = "bqd,bkd->bqk"}> : () -> ()
    %cst_21 = arith.constant dense<0.000000e+00> : vector<2x8x8xf32>
    %50 = tpu.matmul %47, %48, %cst_21 {dimension_numbers = #tpu.dot_dimension_numbers<[2], [2], [1], [1], [0, 0, 0, 1, 1, 1], [0], [0]>} : vector<2x8x32xbf16>, vector<2x8x32xbf16>, vector<2x8x8xf32> -> vector<2x8x8xf32>
    "tpu.trace_stop"() : () -> ()
    %51 = vector.broadcast %45 : vector<2x1x8xf32> to vector<2x8x8xf32>
    %52 = arith.addf %50, %51 : vector<2x8x8xf32>
    %cst_22 = arith.constant dense<0xFF800000> : vector<2x8xf32>
    %53 = vector.multi_reduction <maximumf>, %52, %cst_22 [2] : vector<2x8x8xf32> to vector<2x8xf32>
    %54 = vector.shape_cast %53 : vector<2x8xf32> to vector<2x8x1xf32>
    %55 = vector.broadcast %54 : vector<2x8x1xf32> to vector<2x8x8xf32>
    %56 = arith.subf %52, %55 : vector<2x8x8xf32>
    %57 = math.exp %56 : vector<2x8x8xf32>
    %cst_23 = arith.constant dense<0.000000e+00> : vector<2x8xf32>
    %58 = vector.multi_reduction <add>, %57, %cst_23 [2] : vector<2x8x8xf32> to vector<2x8xf32>
    %59 = vector.shape_cast %58 : vector<2x8xf32> to vector<2x8x1xf32>
    %60 = tpu.reciprocal %59 {approx = true} : vector<2x8x1xf32> -> vector<2x8x1xf32>
    %61 = vector.broadcast %60 : vector<2x8x1xf32> to vector<2x8x8xf32>
    %62 = arith.mulf %57, %61 : vector<2x8x8xf32>
    %63 = arith.truncf %62 : vector<2x8x8xf32> to vector<2x8x8xbf16>
    "tpu.trace_start"() <{level = 10 : i32, message = "bqk,bkd->bqd"}> : () -> ()
    %cst_24 = arith.constant dense<0.000000e+00> : vector<2x8x32xf32>
    %64 = tpu.matmul %63, %49, %cst_24 {dimension_numbers = #tpu.dot_dimension_numbers<[2], [1], [1], [2], [0, 0, 0, 1, 1, 2], [0], [0]>} : vector<2x8x8xbf16>, vector<2x8x32xbf16>, vector<2x8x32xf32> -> vector<2x8x32xf32>
    "tpu.trace_stop"() : () -> ()
    %65 = vector.shape_cast %64 : vector<2x8x32xf32> to vector<16x32xf32>
    %66 = arith.truncf %65 : vector<16x32xf32> to vector<16x32xbf16>
    %67 = vector.extract_strided_slice %12 {offsets = [0, 0], sizes = [32, 128], strides = [1, 1]} : vector<128x128xbf16> to vector<32x128xbf16>
    %cst_25 = arith.constant dense<0.000000e+00> : vector<16x128xf32>
    %68 = tpu.matmul %66, %67, %cst_25 {dimension_numbers = #tpu.dot_dimension_numbers<[1], [0], [0], [1], [0, 0, 1, 1], [], []>} : vector<16x32xbf16>, vector<32x128xbf16>, vector<16x128xf32> -> vector<16x128xf32>
    %69 = arith.addf %46, %68 : vector<16x128xf32>
    %70 = vector.extract_strided_slice %38 {offsets = [0, 0, 32], sizes = [2, 8, 32], strides = [1, 1, 1]} : vector<2x8x128xbf16> to vector<2x8x32xbf16>
    %71 = vector.extract_strided_slice %41 {offsets = [0, 0, 32], sizes = [2, 8, 32], strides = [1, 1, 1]} : vector<2x8x128xbf16> to vector<2x8x32xbf16>
    %72 = vector.extract_strided_slice %44 {offsets = [0, 0, 32], sizes = [2, 8, 32], strides = [1, 1, 1]} : vector<2x8x128xbf16> to vector<2x8x32xbf16>
    "tpu.trace_start"() <{level = 10 : i32, message = "bqd,bkd->bqk"}> : () -> ()
    %cst_26 = arith.constant dense<0.000000e+00> : vector<2x8x8xf32>
    %73 = tpu.matmul %70, %71, %cst_26 {dimension_numbers = #tpu.dot_dimension_numbers<[2], [2], [1], [1], [0, 0, 0, 1, 1, 1], [0], [0]>} : vector<2x8x32xbf16>, vector<2x8x32xbf16>, vector<2x8x8xf32> -> vector<2x8x8xf32>
    "tpu.trace_stop"() : () -> ()
    %74 = vector.broadcast %45 : vector<2x1x8xf32> to vector<2x8x8xf32>
    %75 = arith.addf %73, %74 : vector<2x8x8xf32>
    %cst_27 = arith.constant dense<0xFF800000> : vector<2x8xf32>
    %76 = vector.multi_reduction <maximumf>, %75, %cst_27 [2] : vector<2x8x8xf32> to vector<2x8xf32>
    %77 = vector.shape_cast %76 : vector<2x8xf32> to vector<2x8x1xf32>
    %78 = vector.broadcast %77 : vector<2x8x1xf32> to vector<2x8x8xf32>
    %79 = arith.subf %75, %78 : vector<2x8x8xf32>
    %80 = math.exp %79 : vector<2x8x8xf32>
    %cst_28 = arith.constant dense<0.000000e+00> : vector<2x8xf32>
    %81 = vector.multi_reduction <add>, %80, %cst_28 [2] : vector<2x8x8xf32> to vector<2x8xf32>
    %82 = vector.shape_cast %81 : vector<2x8xf32> to vector<2x8x1xf32>
    %83 = tpu.reciprocal %82 {approx = true} : vector<2x8x1xf32> -> vector<2x8x1xf32>
    %84 = vector.broadcast %83 : vector<2x8x1xf32> to vector<2x8x8xf32>
    %85 = arith.mulf %80, %84 : vector<2x8x8xf32>
    %86 = arith.truncf %85 : vector<2x8x8xf32> to vector<2x8x8xbf16>
    "tpu.trace_start"() <{level = 10 : i32, message = "bqk,bkd->bqd"}> : () -> ()
    %cst_29 = arith.constant dense<0.000000e+00> : vector<2x8x32xf32>
    %87 = tpu.matmul %86, %72, %cst_29 {dimension_numbers = #tpu.dot_dimension_numbers<[2], [1], [1], [2], [0, 0, 0, 1, 1, 2], [0], [0]>} : vector<2x8x8xbf16>, vector<2x8x32xbf16>, vector<2x8x32xf32> -> vector<2x8x32xf32>
    "tpu.trace_stop"() : () -> ()
    %88 = vector.shape_cast %87 : vector<2x8x32xf32> to vector<16x32xf32>
    %89 = arith.truncf %88 : vector<16x32xf32> to vector<16x32xbf16>
    %90 = vector.extract_strided_slice %12 {offsets = [32, 0], sizes = [32, 128], strides = [1, 1]} : vector<128x128xbf16> to vector<32x128xbf16>
    %cst_30 = arith.constant dense<0.000000e+00> : vector<16x128xf32>
    %91 = tpu.matmul %89, %90, %cst_30 {dimension_numbers = #tpu.dot_dimension_numbers<[1], [0], [0], [1], [0, 0, 1, 1], [], []>} : vector<16x32xbf16>, vector<32x128xbf16>, vector<16x128xf32> -> vector<16x128xf32>
    %92 = arith.addf %69, %91 : vector<16x128xf32>
    %93 = vector.extract_strided_slice %38 {offsets = [0, 0, 64], sizes = [2, 8, 32], strides = [1, 1, 1]} : vector<2x8x128xbf16> to vector<2x8x32xbf16>
    %94 = vector.extract_strided_slice %41 {offsets = [0, 0, 64], sizes = [2, 8, 32], strides = [1, 1, 1]} : vector<2x8x128xbf16> to vector<2x8x32xbf16>
    %95 = vector.extract_strided_slice %44 {offsets = [0, 0, 64], sizes = [2, 8, 32], strides = [1, 1, 1]} : vector<2x8x128xbf16> to vector<2x8x32xbf16>
    "tpu.trace_start"() <{level = 10 : i32, message = "bqd,bkd->bqk"}> : () -> ()
    %cst_31 = arith.constant dense<0.000000e+00> : vector<2x8x8xf32>
    %96 = tpu.matmul %93, %94, %cst_31 {dimension_numbers = #tpu.dot_dimension_numbers<[2], [2], [1], [1], [0, 0, 0, 1, 1, 1], [0], [0]>} : vector<2x8x32xbf16>, vector<2x8x32xbf16>, vector<2x8x8xf32> -> vector<2x8x8xf32>
    "tpu.trace_stop"() : () -> ()
    %97 = vector.broadcast %45 : vector<2x1x8xf32> to vector<2x8x8xf32>
    %98 = arith.addf %96, %97 : vector<2x8x8xf32>
    %cst_32 = arith.constant dense<0xFF800000> : vector<2x8xf32>
    %99 = vector.multi_reduction <maximumf>, %98, %cst_32 [2] : vector<2x8x8xf32> to vector<2x8xf32>
    %100 = vector.shape_cast %99 : vector<2x8xf32> to vector<2x8x1xf32>
    %101 = vector.broadcast %100 : vector<2x8x1xf32> to vector<2x8x8xf32>
    %102 = arith.subf %98, %101 : vector<2x8x8xf32>
    %103 = math.exp %102 : vector<2x8x8xf32>
    %cst_33 = arith.constant dense<0.000000e+00> : vector<2x8xf32>
    %104 = vector.multi_reduction <add>, %103, %cst_33 [2] : vector<2x8x8xf32> to vector<2x8xf32>
    %105 = vector.shape_cast %104 : vector<2x8xf32> to vector<2x8x1xf32>
    %106 = tpu.reciprocal %105 {approx = true} : vector<2x8x1xf32> -> vector<2x8x1xf32>
    %107 = vector.broadcast %106 : vector<2x8x1xf32> to vector<2x8x8xf32>
    %108 = arith.mulf %103, %107 : vector<2x8x8xf32>
    %109 = arith.truncf %108 : vector<2x8x8xf32> to vector<2x8x8xbf16>
    "tpu.trace_start"() <{level = 10 : i32, message = "bqk,bkd->bqd"}> : () -> ()
    %cst_34 = arith.constant dense<0.000000e+00> : vector<2x8x32xf32>
    %110 = tpu.matmul %109, %95, %cst_34 {dimension_numbers = #tpu.dot_dimension_numbers<[2], [1], [1], [2], [0, 0, 0, 1, 1, 2], [0], [0]>} : vector<2x8x8xbf16>, vector<2x8x32xbf16>, vector<2x8x32xf32> -> vector<2x8x32xf32>
    "tpu.trace_stop"() : () -> ()
    %111 = vector.shape_cast %110 : vector<2x8x32xf32> to vector<16x32xf32>
    %112 = arith.truncf %111 : vector<16x32xf32> to vector<16x32xbf16>
    %113 = vector.extract_strided_slice %12 {offsets = [64, 0], sizes = [32, 128], strides = [1, 1]} : vector<128x128xbf16> to vector<32x128xbf16>
    %cst_35 = arith.constant dense<0.000000e+00> : vector<16x128xf32>
    %114 = tpu.matmul %112, %113, %cst_35 {dimension_numbers = #tpu.dot_dimension_numbers<[1], [0], [0], [1], [0, 0, 1, 1], [], []>} : vector<16x32xbf16>, vector<32x128xbf16>, vector<16x128xf32> -> vector<16x128xf32>
    %115 = arith.addf %92, %114 : vector<16x128xf32>
    %116 = vector.extract_strided_slice %38 {offsets = [0, 0, 96], sizes = [2, 8, 32], strides = [1, 1, 1]} : vector<2x8x128xbf16> to vector<2x8x32xbf16>
    %117 = vector.extract_strided_slice %41 {offsets = [0, 0, 96], sizes = [2, 8, 32], strides = [1, 1, 1]} : vector<2x8x128xbf16> to vector<2x8x32xbf16>
    %118 = vector.extract_strided_slice %44 {offsets = [0, 0, 96], sizes = [2, 8, 32], strides = [1, 1, 1]} : vector<2x8x128xbf16> to vector<2x8x32xbf16>
    "tpu.trace_start"() <{level = 10 : i32, message = "bqd,bkd->bqk"}> : () -> ()
    %cst_36 = arith.constant dense<0.000000e+00> : vector<2x8x8xf32>
    %119 = tpu.matmul %116, %117, %cst_36 {dimension_numbers = #tpu.dot_dimension_numbers<[2], [2], [1], [1], [0, 0, 0, 1, 1, 1], [0], [0]>} : vector<2x8x32xbf16>, vector<2x8x32xbf16>, vector<2x8x8xf32> -> vector<2x8x8xf32>
    "tpu.trace_stop"() : () -> ()
    %120 = vector.broadcast %45 : vector<2x1x8xf32> to vector<2x8x8xf32>
    %121 = arith.addf %119, %120 : vector<2x8x8xf32>
    %cst_37 = arith.constant dense<0xFF800000> : vector<2x8xf32>
    %122 = vector.multi_reduction <maximumf>, %121, %cst_37 [2] : vector<2x8x8xf32> to vector<2x8xf32>
    %123 = vector.shape_cast %122 : vector<2x8xf32> to vector<2x8x1xf32>
    %124 = vector.broadcast %123 : vector<2x8x1xf32> to vector<2x8x8xf32>
    %125 = arith.subf %121, %124 : vector<2x8x8xf32>
    %126 = math.exp %125 : vector<2x8x8xf32>
    %cst_38 = arith.constant dense<0.000000e+00> : vector<2x8xf32>
    %127 = vector.multi_reduction <add>, %126, %cst_38 [2] : vector<2x8x8xf32> to vector<2x8xf32>
    %128 = vector.shape_cast %127 : vector<2x8xf32> to vector<2x8x1xf32>
    %129 = tpu.reciprocal %128 {approx = true} : vector<2x8x1xf32> -> vector<2x8x1xf32>
    %130 = vector.broadcast %129 : vector<2x8x1xf32> to vector<2x8x8xf32>
    %131 = arith.mulf %126, %130 : vector<2x8x8xf32>
    %132 = arith.truncf %131 : vector<2x8x8xf32> to vector<2x8x8xbf16>
    "tpu.trace_start"() <{level = 10 : i32, message = "bqk,bkd->bqd"}> : () -> ()
    %cst_39 = arith.constant dense<0.000000e+00> : vector<2x8x32xf32>
    %133 = tpu.matmul %132, %118, %cst_39 {dimension_numbers = #tpu.dot_dimension_numbers<[2], [1], [1], [2], [0, 0, 0, 1, 1, 2], [0], [0]>} : vector<2x8x8xbf16>, vector<2x8x32xbf16>, vector<2x8x32xf32> -> vector<2x8x32xf32>
    "tpu.trace_stop"() : () -> ()
    %134 = vector.shape_cast %133 : vector<2x8x32xf32> to vector<16x32xf32>
    %135 = arith.truncf %134 : vector<16x32xf32> to vector<16x32xbf16>
    %136 = vector.extract_strided_slice %12 {offsets = [96, 0], sizes = [32, 128], strides = [1, 1]} : vector<128x128xbf16> to vector<32x128xbf16>
    %cst_40 = arith.constant dense<0.000000e+00> : vector<16x128xf32>
    %137 = tpu.matmul %135, %136, %cst_40 {dimension_numbers = #tpu.dot_dimension_numbers<[1], [0], [0], [1], [0, 0, 1, 1], [], []>} : vector<16x32xbf16>, vector<32x128xbf16>, vector<16x128xf32> -> vector<16x128xf32>
    %138 = arith.addf %115, %137 : vector<16x128xf32>
    %139 = vector.broadcast %25 : vector<1x128xf32> to vector<16x128xf32>
    %140 = arith.addf %138, %139 : vector<16x128xf32>
    %141 = arith.addf %31, %140 : vector<16x128xf32>
    %cst_41 = arith.constant dense<0.000000e+00> : vector<16xf32>
    %142 = vector.multi_reduction <add>, %141, %cst_41 [1] : vector<16x128xf32> to vector<16xf32>
    %143 = vector.shape_cast %142 : vector<16xf32> to vector<16x1xf32>
    %cst_42 = arith.constant 1.280000e+02 : f32
    %144 = vector.broadcast %cst_42 : f32 to vector<16x1xf32>
    %145 = arith.divf %143, %144 : vector<16x1xf32>
    %146 = vector.broadcast %145 : vector<16x1xf32> to vector<16x128xf32>
    %147 = arith.subf %141, %146 : vector<16x128xf32>
    %148 = arith.mulf %147, %147 : vector<16x128xf32>
    %cst_43 = arith.constant dense<0.000000e+00> : vector<16xf32>
    %149 = vector.multi_reduction <add>, %148, %cst_43 [1] : vector<16x128xf32> to vector<16xf32>
    %150 = vector.shape_cast %149 : vector<16xf32> to vector<16x1xf32>
    %cst_44 = arith.constant 1.280000e+02 : f32
    %151 = vector.broadcast %cst_44 : f32 to vector<16x1xf32>
    %152 = arith.divf %150, %151 : vector<16x1xf32>
    %153 = vector.broadcast %145 : vector<16x1xf32> to vector<16x128xf32>
    %154 = arith.subf %141, %153 : vector<16x128xf32>
    %cst_45 = arith.constant 9.99999974E-6 : f32
    %155 = vector.broadcast %cst_45 : f32 to vector<16x1xf32>
    %156 = arith.addf %152, %155 : vector<16x1xf32>
    %157 = math.rsqrt %156 : vector<16x1xf32>
    %158 = vector.broadcast %157 : vector<16x1xf32> to vector<16x128xf32>
    %159 = arith.mulf %154, %158 : vector<16x128xf32>
    %160 = vector.broadcast %26 : vector<1x128xf32> to vector<16x128xf32>
    %161 = arith.mulf %159, %160 : vector<16x128xf32>
    %162 = vector.broadcast %27 : vector<1x128xf32> to vector<16x128xf32>
    %163 = arith.addf %161, %162 : vector<16x128xf32>
    %164 = arith.truncf %163 : vector<16x128xf32> to vector<16x128xbf16>
    %cst_46 = arith.constant dense<0.000000e+00> : vector<16x256xf32>
    %165 = tpu.matmul %164, %15, %cst_46 {dimension_numbers = #tpu.dot_dimension_numbers<[1], [0], [0], [1], [0, 0, 1, 1], [], []>} : vector<16x128xbf16>, vector<128x256xbf16>, vector<16x256xf32> -> vector<16x256xf32>
    %166 = vector.broadcast %18 : vector<1x256xf32> to vector<16x256xf32>
    %167 = arith.addf %165, %166 : vector<16x256xf32>
    %cst_47 = arith.constant 0.000000e+00 : f32
    %168 = vector.broadcast %cst_47 : f32 to vector<16x256xf32>
    %169 = arith.maximumf %167, %168 : vector<16x256xf32>
    %170 = arith.truncf %169 : vector<16x256xf32> to vector<16x256xbf16>
    %cst_48 = arith.constant dense<0.000000e+00> : vector<16x128xf32>
    %171 = tpu.matmul %170, %21, %cst_48 {dimension_numbers = #tpu.dot_dimension_numbers<[1], [0], [0], [1], [0, 0, 1, 1], [], []>} : vector<16x256xbf16>, vector<256x128xbf16>, vector<16x128xf32> -> vector<16x128xf32>
    %172 = vector.broadcast %28 : vector<1x128xf32> to vector<16x128xf32>
    %173 = arith.addf %171, %172 : vector<16x128xf32>
    %174 = arith.addf %163, %173 : vector<16x128xf32>
    %cst_49 = arith.constant dense<0.000000e+00> : vector<16xf32>
    %175 = vector.multi_reduction <add>, %174, %cst_49 [1] : vector<16x128xf32> to vector<16xf32>
    %176 = vector.shape_cast %175 : vector<16xf32> to vector<16x1xf32>
    %cst_50 = arith.constant 1.280000e+02 : f32
    %177 = vector.broadcast %cst_50 : f32 to vector<16x1xf32>
    %178 = arith.divf %176, %177 : vector<16x1xf32>
    %179 = vector.broadcast %178 : vector<16x1xf32> to vector<16x128xf32>
    %180 = arith.subf %174, %179 : vector<16x128xf32>
    %181 = arith.mulf %180, %180 : vector<16x128xf32>
    %cst_51 = arith.constant dense<0.000000e+00> : vector<16xf32>
    %182 = vector.multi_reduction <add>, %181, %cst_51 [1] : vector<16x128xf32> to vector<16xf32>
    %183 = vector.shape_cast %182 : vector<16xf32> to vector<16x1xf32>
    %cst_52 = arith.constant 1.280000e+02 : f32
    %184 = vector.broadcast %cst_52 : f32 to vector<16x1xf32>
    %185 = arith.divf %183, %184 : vector<16x1xf32>
    %186 = vector.broadcast %178 : vector<16x1xf32> to vector<16x128xf32>
    %187 = arith.subf %174, %186 : vector<16x128xf32>
    %cst_53 = arith.constant 9.99999974E-6 : f32
    %188 = vector.broadcast %cst_53 : f32 to vector<16x1xf32>
    %189 = arith.addf %185, %188 : vector<16x1xf32>
    %190 = math.rsqrt %189 : vector<16x1xf32>
    %191 = vector.broadcast %190 : vector<16x1xf32> to vector<16x128xf32>
    %192 = arith.mulf %187, %191 : vector<16x128xf32>
    %193 = vector.broadcast %29 : vector<1x128xf32> to vector<16x128xf32>
    %194 = arith.mulf %192, %193 : vector<16x128xf32>
    %195 = vector.broadcast %30 : vector<1x128xf32> to vector<16x128xf32>
    %196 = arith.addf %194, %195 : vector<16x128xf32>
    %197 = vector.shape_cast %196 : vector<16x128xf32> to vector<2x8x128xf32>
    %c0_54 = arith.constant 0 : index
    %c0_55 = arith.constant 0 : index
    %c0_56 = arith.constant 0 : index
    %198 = vector.load %arg11[%c0_54, %c0_55, %c0_56] : memref<2x8x128xf32, #tpu.memory_space<vmem>>, vector<2x8x128xf32>
    tpu.vector_store %arg11[%c0_54, %c0_55, %c0_56], %197 {strides = array<i32>} : memref<2x8x128xf32, #tpu.memory_space<vmem>>, vector<2x8x128xf32>,
    return
  }
  func.func @transform_0(%arg0: i32, %arg1: i32) -> (i32, i32, i32) {
    %c0_i32 = arith.constant 0 : i32
    %c0_i32_0 = arith.constant 0 : i32
    %c0_i32_1 = arith.constant 0 : i32
    return %arg0, %c0_i32, %c0_i32_0 : i32, i32, i32
  }
  func.func @transform_1(%arg0: i32, %arg1: i32) -> (i32, i32, i32) {
    %c0_i32 = arith.constant 0 : i32
    %c0_i32_0 = arith.constant 0 : i32
    %c0_i32_1 = arith.constant 0 : i32
    return %arg0, %c0_i32, %c0_i32_0 : i32, i32, i32
  }
  func.func @transform_2(%arg0: i32, %arg1: i32) -> (i32, i32, i32) {
    %c0_i32 = arith.constant 0 : i32
    %c0_i32_0 = arith.constant 0 : i32
    %c0_i32_1 = arith.constant 0 : i32
    %c0_i32_2 = arith.constant 0 : i32
    return %c0_i32, %c0_i32_0, %c0_i32_1 : i32, i32, i32
  }
  func.func @transform_3(%arg0: i32, %arg1: i32) -> (i32, i32, i32) {
    %c0_i32 = arith.constant 0 : i32
    %c0_i32_0 = arith.constant 0 : i32
    %c0_i32_1 = arith.constant 0 : i32
    %c0_i32_2 = arith.constant 0 : i32
    return %c0_i32, %c0_i32_0, %c0_i32_1 : i32, i32, i32
  }
  func.func @transform_4(%arg0: i32, %arg1: i32) -> (i32, i32, i32) {
    %c0_i32 = arith.constant 0 : i32
    %c0_i32_0 = arith.constant 0 : i32
    %c0_i32_1 = arith.constant 0 : i32
    %c0_i32_2 = arith.constant 0 : i32
    return %c0_i32, %c0_i32_0, %c0_i32_1 : i32, i32, i32
  }
  func.func @transform_5(%arg0: i32, %arg1: i32) -> (i32, i32, i32) {
    %c0_i32 = arith.constant 0 : i32
    %c0_i32_0 = arith.constant 0 : i32
    %c0_i32_1 = arith.constant 0 : i32
    %c0_i32_2 = arith.constant 0 : i32
    return %c0_i32, %c0_i32_0, %c0_i32_1 : i32, i32, i32
  }
  func.func @transform_6(%arg0: i32, %arg1: i32) -> (i32, i32, i32) {
    %c0_i32 = arith.constant 0 : i32
    %c0_i32_0 = arith.constant 0 : i32
    %c0_i32_1 = arith.constant 0 : i32
    %c0_i32_2 = arith.constant 0 : i32
    return %c0_i32, %c0_i32_0, %c0_i32_1 : i32, i32, i32
  }
  func.func @transform_7(%arg0: i32, %arg1: i32) -> (i32, i32, i32) {
    %c0_i32 = arith.constant 0 : i32
    %c0_i32_0 = arith.constant 0 : i32
    %c0_i32_1 = arith.constant 0 : i32
    %c0_i32_2 = arith.constant 0 : i32
    return %c0_i32, %c0_i32_0, %c0_i32_1 : i32, i32, i32
  }
  func.func @transform_8(%arg0: i32, %arg1: i32) -> (i32, i32, i32) {
    %c0_i32 = arith.constant 0 : i32
    %c0_i32_0 = arith.constant 0 : i32
    %c0_i32_1 = arith.constant 0 : i32
    %c0_i32_2 = arith.constant 0 : i32
    return %c0_i32, %c0_i32_0, %c0_i32_1 : i32, i32, i32
  }
  func.func @transform_9(%arg0: i32, %arg1: i32) -> (i32, i32, i32) {
    %c0_i32 = arith.constant 0 : i32
    %c0_i32_0 = arith.constant 0 : i32
    %c0_i32_1 = arith.constant 0 : i32
    return %arg0, %c0_i32, %c0_i32_0 : i32, i32, i32
  }
}

</mosaic_0001>

<llo_original>
// kernel: tpu_custom_call.1
$region0: #{tpu_custom_call.1}
  #allocation0 [shape = 'u32[]', space=smem, size = 0x4, offset = 0x4, fixed_abs, tag = 'smem constant byte address 0x4 - core index']
  #allocation1 [shape = 'u32[144,128]{1,0:T(1,128)}', space=vmem, size = 0x12000, scoped, tag = 'internal scratch']
  %s0 = inlined_call_operand.hbm [shape: f32[4,8,128], index: 0, kind: input, shape index: {}, may-alias: {0,9}]
  %s1 = inlined_call_operand.hbm [shape: f32[4,1,8], index: 1, kind: input, shape index: {}]
  %s2 = inlined_call_operand.hbm [shape: bf16[2,128,384], index: 2, kind: input, shape index: {}]
  %s3 = inlined_call_operand.hbm [shape: f32[2,1,384], index: 3, kind: input, shape index: {}]
  %s4 = inlined_call_operand.hbm [shape: bf16[2,128,128], index: 4, kind: input, shape index: {}]
  %s5 = inlined_call_operand.hbm [shape: bf16[2,128,256], index: 5, kind: input, shape index: {}]
  %s6 = inlined_call_operand.hbm [shape: f32[2,1,256], index: 6, kind: input, shape index: {}]
  %s7 = inlined_call_operand.hbm [shape: bf16[2,256,128], index: 7, kind: input, shape index: {}]
  %s8 = inlined_call_operand.hbm [shape: f32[2,6,128], index: 8, kind: input, shape index: {}]
  %s9 = inlined_call_operand.hbm [shape: f32[4,8,128], index: 9, kind: output, shape index: {}, may-alias: {0,9}]
  %s10 = sld [smem:[#allocation0]]
  $region109: #{tpu_custom_call.1} parent=0
    _
  %s12 = ssub.s32 1, %s10
  %s13 = scalar_select 0, %s12, %s10
  $region1: #{tpu_custom_call.1} parent=0
    #allocation2 [shape = 'u8[16384]{0}', space=vmem, size = 0x4000, scoped, tag = 'input window, operand 0']
    #allocation3 [shape = 's32[2]{0}', space=sflag, size = 0x8, scoped, tag = 'scoped memory for tpu_custom_call.1']
    #allocation4 [shape = 's32[2]{0}', space=sflag, size = 0x8, scoped, tag = 'scoped memory for tpu_custom_call.1']
    #allocation5 [shape = 'u8[2048]{0}', space=vmem, size = 0x800, scoped, tag = 'input window, operand 1']
    #allocation6 [shape = 's32[2]{0}', space=sflag, size = 0x8, scoped, tag = 'scoped memory for tpu_custom_call.1']
    #allocation7 [shape = 'u8[196608]{0}', space=vmem, size = 0x30000, scoped, tag = 'input window, operand 2, single buffered']
    #allocation8 [shape = 'u8[3072]{0}', space=vmem, size = 0xc00, scoped, tag = 'input window, operand 3, single buffered']
    #allocation9 [shape = 's32[1]{0}', space=sflag, size = 0x4, scoped, tag = 'scoped memory for tpu_custom_call.1']
    #allocation10 [shape = 'u8[65536]{0}', space=vmem, size = 0x10000, scoped, tag = 'input window, operand 4, single buffered']
    #allocation11 [shape = 'u8[131072]{0}', space=vmem, size = 0x20000, scoped, tag = 'input window, operand 5, single buffered']
    #allocation12 [shape = 's32[1]{0}', space=sflag, size = 0x4, scoped, tag = 'scoped memory for tpu_custom_call.1']
    #allocation13 [shape = 'u8[2048]{0}', space=vmem, size = 0x800, scoped, tag = 'input window, operand 6, single buffered']
    #allocation14 [shape = 'u8[131072]{0}', space=vmem, size = 0x20000, scoped, tag = 'input window, operand 7, single buffered']
    #allocation15 [shape = 's32[1]{0}', space=sflag, size = 0x4, scoped, tag = 'scoped memory for tpu_custom_call.1']
    #allocation16 [shape = 'u8[8192]{0}', space=vmem, size = 0x2000, scoped, tag = 'input window, operand 8, single buffered']
    #allocation17 [shape = 'u8[16384]{0}', space=vmem, size = 0x4000, scoped, tag = 'output window, operand 0']
    %14 = vsyncpa [#allocation3], 0
    %s15 = scalar_lea.sflag [#allocation3], 1
    %16 = vsyncpa %s15, 0
    %17 = vsyncpa [#allocation6], 0
    %s18 = scalar_lea.sflag [#allocation6], 1
    %19 = vsyncpa %s18, 0
    %20 = vsyncpa [#allocation9], 0
    %21 = vsyncpa [#allocation12], 0
    %22 = vsyncpa [#allocation15], 0
    %23 = vsyncpa [#allocation4], 0
    %s24 = scalar_lea.sflag [#allocation4], 1
    %25 = vsyncpa %s24, 0
    loop: start=0, step=1, limit=6
    $region2: #{tpu_custom_call.1} parent=1 // loop_pre_header
      _
    $region3: #{tpu_custom_call.1} parent=1 // loop_header
      %s27 = sphi 0, %s31
      %p28 = scmp.ge.s32.totalorder %s27, 6
      %s34 = sphi 0, %s46
      %s35 = sphi 0, %s42
      %s36 = sphi 0, %s34
      %s37 = sphi 0, %s35
      %s38 = sphi 0, %s36
      %s39 = sphi 0, %s37
      %s49 = sphi 0, %s51
      %s52 = sphi 0, %s49
      %s53 = sphi 0, %s52
      %s69 = sphi 0, %s53
      %s75 = sphi 0, %s77
      %s78 = sphi 0, %s75
      %s79 = sphi 0, %s78
      %s95 = sphi 0, %s79
      %s99 = sphi 0, %s99
      %s101 = sphi 0, %s99
      %s102 = sphi 0, %s101
      %s116 = sphi 0, %s102
      %s120 = sphi 0, %s120
      %s122 = sphi 0, %s120
      %s123 = sphi 0, %s122
      %s137 = sphi 0, %s123
      %s141 = sphi 0, %s141
      %s143 = sphi 0, %s141
      %s144 = sphi 0, %s143
      %s158 = sphi 0, %s144
      %s162 = sphi 0, %s162
      %s164 = sphi 0, %s162
      %s165 = sphi 0, %s164
      %s179 = sphi 0, %s165
      %s183 = sphi 0, %s183
      %s185 = sphi 0, %s183
      %s186 = sphi 0, %s185
      %s200 = sphi 0, %s186
      %s204 = sphi 0, %s204
      %s206 = sphi 0, %s204
      %s207 = sphi 0, %s206
      %s221 = sphi 0, %s207
      %s225 = sphi 0, %s225
      %s227 = sphi 0, %s225
      %s228 = sphi 0, %s227
      %s242 = sphi 0, %s228
      %s248 = sphi 0, %s250
      %s251 = sphi 0, %s248
      %s252 = sphi 0, %s251
      %s268 = sphi 0, %s252
    $region4: #{tpu_custom_call.1} parent=1 // loop_header_branch
      %30 = sbr.rel (%p28) target = $region8
    $region5: #{tpu_custom_call.1} parent=1 // loop_body
      %s32 = ssub.s32 %s27, 1
      %s33 = ssub.s32 %s27, 2
      %s40 = sadd.s32 1, %s35
      %p41 = scmp.ge.s32.totalorder %s40, 2
      %s42 = scalar_select %p41, 0, %s40
      %s43 = sadd.s32 1, %s34
      %s44 = scalar_select %p41, %s43, %s34
      %p45 = scmp.ge.s32.totalorder %s44, 2
      %s46 = scalar_select %p45, 0, %s44
      %s47 = ssub.s32 %s34, %s46
      %p48 = scmp.eq.s32.totalorder %s47, 0
      %s50 = sadd.s32 %s49, 1
      %s51 = scalar_select %p48, %s49, %s50
      %p54 = pneg %p48
      %p55 = scmp.eq.s32.totalorder %s27, 3
      %p56 = por %p54, %p55
      %p57 = scmp.ne.s32.totalorder %s49, %s52
      %p58 = scmp.eq.s32.totalorder %s27, 0
      %p59 = por %p57, %p58
      %p60 = scmp.ne.s32.totalorder %s49, %s52
      %p61 = scmp.eq.s32.totalorder %s32, 3
      %p62 = por %p60, %p61
      %p63 = scmp.ne.s32.totalorder %s52, %s53
      %p64 = scmp.eq.s32.totalorder %s32, 0
      %p65 = por %p63, %p64
      %p66 = scmp.ne.s32.totalorder %s52, %s53
      %p67 = scmp.eq.s32.totalorder %s33, 3
      %p68 = por %p66, %p67
      %p70 = scmp.ne.s32.totalorder %s53, %s69
      %p71 = scmp.eq.s32.totalorder %s33, 0
      %p72 = por %p70, %p71
      %s73 = ssub.s32 %s34, %s46
      %p74 = scmp.eq.s32.totalorder %s73, 0
      %s76 = sadd.s32 %s75, 1
      %s77 = scalar_select %p74, %s75, %s76
      %p80 = pneg %p74
      %p81 = scmp.eq.s32.totalorder %s27, 3
      %p82 = por %p80, %p81
      %p83 = scmp.ne.s32.totalorder %s75, %s78
      %p84 = scmp.eq.s32.totalorder %s27, 0
      %p85 = por %p83, %p84
      %p86 = scmp.ne.s32.totalorder %s75, %s78
      %p87 = scmp.eq.s32.totalorder %s32, 3
      %p88 = por %p86, %p87
      %p89 = scmp.ne.s32.totalorder %s78, %s79
      %p90 = scmp.eq.s32.totalorder %s32, 0
      %p91 = por %p89, %p90
      %p92 = scmp.ne.s32.totalorder %s78, %s79
      %p93 = scmp.eq.s32.totalorder %s33, 3
      %p94 = por %p92, %p93
      %p96 = scmp.ne.s32.totalorder %s79, %s95
      %p97 = scmp.eq.s32.totalorder %s33, 0
      %p98 = por %p96, %p97
      %s100 = sadd.s32 %s99, 1
      %p103 = scmp.eq.s32.totalorder %s27, 3
      %p104 = scmp.ne.s32.totalorder %s99, %s101
      %p105 = scmp.eq.s32.totalorder %s27, 0
      %p106 = por %p104, %p105
      %p107 = scmp.ne.s32.totalorder %s99, %s101
      %p108 = scmp.eq.s32.totalorder %s32, 3
      %p109 = por %p107, %p108
      %p110 = scmp.ne.s32.totalorder %s101, %s102
      %p111 = scmp.eq.s32.totalorder %s32, 0
      %p112 = por %p110, %p111
      %p113 = scmp.ne.s32.totalorder %s101, %s102
      %p114 = scmp.eq.s32.totalorder %s33, 3
      %p115 = por %p113, %p114
      %p117 = scmp.ne.s32.totalorder %s102, %s116
      %p118 = scmp.eq.s32.totalorder %s33, 0
      %p119 = por %p117, %p118
      %s121 = sadd.s32 %s120, 1
      %p124 = scmp.eq.s32.totalorder %s27, 3
      %p125 = scmp.ne.s32.totalorder %s120, %s122
      %p126 = scmp.eq.s32.totalorder %s27, 0
      %p127 = por %p125, %p126
      %p128 = scmp.ne.s32.totalorder %s120, %s122
      %p129 = scmp.eq.s32.totalorder %s32, 3
      %p130 = por %p128, %p129
      %p131 = scmp.ne.s32.totalorder %s122, %s123
      %p132 = scmp.eq.s32.totalorder %s32, 0
      %p133 = por %p131, %p132
      %p134 = scmp.ne.s32.totalorder %s122, %s123
      %p135 = scmp.eq.s32.totalorder %s33, 3
      %p136 = por %p134, %p135
      %p138 = scmp.ne.s32.totalorder %s123, %s137
      %p139 = scmp.eq.s32.totalorder %s33, 0
      %p140 = por %p138, %p139
      %s142 = sadd.s32 %s141, 1
      %p145 = scmp.eq.s32.totalorder %s27, 3
      %p146 = scmp.ne.s32.totalorder %s141, %s143
      %p147 = scmp.eq.s32.totalorder %s27, 0
      %p148 = por %p146, %p147
      %p149 = scmp.ne.s32.totalorder %s141, %s143
      %p150 = scmp.eq.s32.totalorder %s32, 3
      %p151 = por %p149, %p150
      %p152 = scmp.ne.s32.totalorder %s143, %s144
      %p153 = scmp.eq.s32.totalorder %s32, 0
      %p154 = por %p152, %p153
      %p155 = scmp.ne.s32.totalorder %s143, %s144
      %p156 = scmp.eq.s32.totalorder %s33, 3
      %p157 = por %p155, %p156
      %p159 = scmp.ne.s32.totalorder %s144, %s158
      %p160 = scmp.eq.s32.totalorder %s33, 0
      %p161 = por %p159, %p160
      %s163 = sadd.s32 %s162, 1
      %p166 = scmp.eq.s32.totalorder %s27, 3
      %p167 = scmp.ne.s32.totalorder %s162, %s164
      %p168 = scmp.eq.s32.totalorder %s27, 0
      %p169 = por %p167, %p168
      %p170 = scmp.ne.s32.totalorder %s162, %s164
      %p171 = scmp.eq.s32.totalorder %s32, 3
      %p172 = por %p170, %p171
      %p173 = scmp.ne.s32.totalorder %s164, %s165
      %p174 = scmp.eq.s32.totalorder %s32, 0
      %p175 = por %p173, %p174
      %p176 = scmp.ne.s32.totalorder %s164, %s165
      %p177 = scmp.eq.s32.totalorder %s33, 3
      %p178 = por %p176, %p177
      %p180 = scmp.ne.s32.totalorder %s165, %s179
      %p181 = scmp.eq.s32.totalorder %s33, 0
      %p182 = por %p180, %p181
      %s184 = sadd.s32 %s183, 1
      %p187 = scmp.eq.s32.totalorder %s27, 3
      %p188 = scmp.ne.s32.totalorder %s183, %s185
      %p189 = scmp.eq.s32.totalorder %s27, 0
      %p190 = por %p188, %p189
      %p191 = scmp.ne.s32.totalorder %s183, %s185
      %p192 = scmp.eq.s32.totalorder %s32, 3
      %p193 = por %p191, %p192
      %p194 = scmp.ne.s32.totalorder %s185, %s186
      %p195 = scmp.eq.s32.totalorder %s32, 0
      %p196 = por %p194, %p195
      %p197 = scmp.ne.s32.totalorder %s185, %s186
      %p198 = scmp.eq.s32.totalorder %s33, 3
      %p199 = por %p197, %p198
      %p201 = scmp.ne.s32.totalorder %s186, %s200
      %p202 = scmp.eq.s32.totalorder %s33, 0
      %p203 = por %p201, %p202
      %s205 = sadd.s32 %s204, 1
      %p208 = scmp.eq.s32.totalorder %s27, 3
      %p209 = scmp.ne.s32.totalorder %s204, %s206
      %p210 = scmp.eq.s32.totalorder %s27, 0
      %p211 = por %p209, %p210
      %p212 = scmp.ne.s32.totalorder %s204, %s206
      %p213 = scmp.eq.s32.totalorder %s32, 3
      %p214 = por %p212, %p213
      %p215 = scmp.ne.s32.totalorder %s206, %s207
      %p216 = scmp.eq.s32.totalorder %s32, 0
      %p217 = por %p215, %p216
      %p218 = scmp.ne.s32.totalorder %s206, %s207
      %p219 = scmp.eq.s32.totalorder %s33, 3
      %p220 = por %p218, %p219
      %p222 = scmp.ne.s32.totalorder %s207, %s221
      %p223 = scmp.eq.s32.totalorder %s33, 0
      %p224 = por %p222, %p223
      %s226 = sadd.s32 %s225, 1
      %p229 = scmp.eq.s32.totalorder %s27, 3
      %p230 = scmp.ne.s32.totalorder %s225, %s227
      %p231 = scmp.eq.s32.totalorder %s27, 0
      %p232 = por %p230, %p231
      %p233 = scmp.ne.s32.totalorder %s225, %s227
      %p234 = scmp.eq.s32.totalorder %s32, 3
      %p235 = por %p233, %p234
      %p236 = scmp.ne.s32.totalorder %s227, %s228
      %p237 = scmp.eq.s32.totalorder %s32, 0
      %p238 = por %p236, %p237
      %p239 = scmp.ne.s32.totalorder %s227, %s228
      %p240 = scmp.eq.s32.totalorder %s33, 3
      %p241 = por %p239, %p240
      %p243 = scmp.ne.s32.totalorder %s228, %s242
      %p244 = scmp.eq.s32.totalorder %s33, 0
      %p245 = por %p243, %p244
      %s246 = ssub.s32 %s34, %s46
      %p247 = scmp.eq.s32.totalorder %s246, 0
      %s249 = sadd.s32 %s248, 1
      %s250 = scalar_select %p247, %s248, %s249
      %p253 = pneg %p247
      %p254 = scmp.eq.s32.totalorder %s27, 3
      %p255 = por %p253, %p254
      %p256 = scmp.ne.s32.totalorder %s248, %s251
      %p257 = scmp.eq.s32.totalorder %s27, 0
      %p258 = por %p256, %p257
      %p259 = scmp.ne.s32.totalorder %s248, %s251
      %p260 = scmp.eq.s32.totalorder %s32, 3
      %p261 = por %p259, %p260
      %p262 = scmp.ne.s32.totalorder %s251, %s252
      %p263 = scmp.eq.s32.totalorder %s32, 0
      %p264 = por %p262, %p263
      %p265 = scmp.ne.s32.totalorder %s251, %s252
      %p266 = scmp.eq.s32.totalorder %s33, 3
      %p267 = por %p265, %p266
      %p269 = scmp.ne.s32.totalorder %s252, %s268
      %p270 = scmp.eq.s32.totalorder %s33, 0
      %p271 = por %p269, %p270
      %p272 = scmp.le.s32.totalorder 1, %s27
      %p273 = scmp.lt.s32.totalorder %s27, 5
      %p274 = pnand %p272, %p273
      %p275 = pneg %p274
      // Predicated region
      $region9: #{tpu_custom_call.1} parent=5 // pred_check
        _
      $region10: #{tpu_custom_call.1} parent=5 // pred_check_branch
        %277 = sbr.rel (%p274) target = $region12
      $region11: #{tpu_custom_call.1} parent=5 // pred_region
        %s278 = ssub.s32 %s27, 1
        // Predicated region
        $region13: #{tpu_custom_call.1} parent=11 // pred_check
          %p279 = pneg %p112
        $region14: #{tpu_custom_call.1} parent=11 // pred_check_branch
          %281 = sbr.rel (%p279) target = $region16
        $region15: #{tpu_custom_call.1} parent=11 // pred_region
          %s283 = ssub.s32 6144, 6144
          %284 = vsyncadd [#allocation6], %s283
          %s285 = sshll.u32 [#allocation7], 4
          %s286 = int_to_ptr.vmem [resolvable:$true] %s285
          %291 = dma.hbm_to_vmem [thread:$0]  %s2, 6144, %s286, [#allocation6], 192, 192, 12
        $region16: #{tpu_custom_call.1} parent=11 // pred_fallthru
          _
        // Predicated region
        $region17: #{tpu_custom_call.1} parent=11 // pred_check
          %p292 = pneg %p133
        $region18: #{tpu_custom_call.1} parent=11 // pred_check_branch
          %294 = sbr.rel (%p292) target = $region20
        $region19: #{tpu_custom_call.1} parent=11 // pred_region
          %s296 = ssub.s32 96, 96
          %297 = vsyncadd [#allocation9], %s296
          %s298 = sshll.u32 [#allocation8], 4
          %s299 = int_to_ptr.vmem [resolvable:$true] %s298
          %304 = dma.hbm_to_vmem [thread:$0]  %s3, 96, %s299, [#allocation9], 48, 48, 3
        $region20: #{tpu_custom_call.1} parent=11 // pred_fallthru
          _
        // Predicated region
        $region21: #{tpu_custom_call.1} parent=11 // pred_check
          %p305 = pneg %p154
        $region22: #{tpu_custom_call.1} parent=11 // pred_check_branch
          %307 = sbr.rel (%p305) target = $region24
        $region23: #{tpu_custom_call.1} parent=11 // pred_region
          %s309 = ssub.s32 2048, 2048
          %310 = vsyncadd [#allocation9], %s309
          %s311 = sshll.u32 [#allocation10], 4
          %s312 = int_to_ptr.vmem [resolvable:$true] %s311
          %317 = dma.hbm_to_vmem [thread:$0]  %s4, 2048, %s312, [#allocation9], 64, 64, 4
        $region24: #{tpu_custom_call.1} parent=11 // pred_fallthru
          _
        // Predicated region
        $region25: #{tpu_custom_call.1} parent=11 // pred_check
          %p318 = pneg %p175
        $region26: #{tpu_custom_call.1} parent=11 // pred_check_branch
          %320 = sbr.rel (%p318) target = $region28
        $region27: #{tpu_custom_call.1} parent=11 // pred_region
          %s322 = ssub.s32 4096, 4096
          %323 = vsyncadd [#allocation12], %s322
          %s324 = sshll.u32 [#allocation11], 4
          %s325 = int_to_ptr.vmem [resolvable:$true] %s324
          %330 = dma.hbm_to_vmem [thread:$0]  %s5, 4096, %s325, [#allocation12], 128, 128, 8
        $region28: #{tpu_custom_call.1} parent=11 // pred_fallthru
          _
        // Predicated region
        $region29: #{tpu_custom_call.1} parent=11 // pred_check
          %p331 = pneg %p196
        $region30: #{tpu_custom_call.1} parent=11 // pred_check_branch
          %333 = sbr.rel (%p331) target = $region32
        $region31: #{tpu_custom_call.1} parent=11 // pred_region
          %s335 = ssub.s32 64, 64
          %336 = vsyncadd [#allocation12], %s335
          %s337 = sshll.u32 [#allocation13], 4
          %s338 = int_to_ptr.vmem [resolvable:$true] %s337
          %343 = dma.hbm_to_vmem [thread:$0]  %s6, 64, %s338, [#allocation12], 32, 32, 2
        $region32: #{tpu_custom_call.1} parent=11 // pred_fallthru
          _
        // Predicated region
        $region33: #{tpu_custom_call.1} parent=11 // pred_check
          %p344 = pneg %p217
        $region34: #{tpu_custom_call.1} parent=11 // pred_check_branch
          %346 = sbr.rel (%p344) target = $region36
        $region35: #{tpu_custom_call.1} parent=11 // pred_region
          %s348 = ssub.s32 4096, 4096
          %349 = vsyncadd [#allocation15], %s348
          %s350 = sshll.u32 [#allocation14], 4
          %s351 = int_to_ptr.vmem [resolvable:$true] %s350
          %356 = dma.hbm_to_vmem [thread:$0]  %s7, 4096, %s351, [#allocation15], 64, 64, 4
        $region36: #{tpu_custom_call.1} parent=11 // pred_fallthru
          _
        // Predicated region
        $region37: #{tpu_custom_call.1} parent=11 // pred_check
          %p357 = pneg %p238
        $region38: #{tpu_custom_call.1} parent=11 // pred_check_branch
          %359 = sbr.rel (%p357) target = $region40
        $region39: #{tpu_custom_call.1} parent=11 // pred_region
          %s361 = ssub.s32 256, 256
          %362 = vsyncadd [#allocation15], %s361
          %s363 = sshll.u32 [#allocation16], 4
          %s364 = int_to_ptr.vmem [resolvable:$true] %s363
          %369 = dma.hbm_to_vmem [thread:$0]  %s8, 256, %s364, [#allocation15], 128, 128, 8
        $region40: #{tpu_custom_call.1} parent=11 // pred_fallthru
          _
      $region12: #{tpu_custom_call.1} parent=5 // pred_fallthru
        _
      %p370 = scmp.lt.s32.totalorder %s27, 4
      // Predicated region
      $region41: #{tpu_custom_call.1} parent=5 // pred_check
        %p371 = pneg %p370
      $region42: #{tpu_custom_call.1} parent=5 // pred_check_branch
        %373 = sbr.rel (%p371) target = $region44
      $region43: #{tpu_custom_call.1} parent=5 // pred_region
        // Predicated region
        $region45: #{tpu_custom_call.1} parent=43 // pred_check
          %p374 = pneg %p59
        $region46: #{tpu_custom_call.1} parent=43 // pred_check_branch
          %376 = sbr.rel (%p374) target = $region48
        $region47: #{tpu_custom_call.1} parent=43 // pred_region
          %s377 = sand.u32 %s49, 1
          %s378 = scalar_lea.sflag [#allocation3], %s377
          %s379 = sand.u32 %s49, 1
          %s380 = smul.addr %s379, 16
          %s381 = scalar_lea.vmem [#allocation2], %s380
          %s382 = smul.u32 2, %s34
          %s384 = ssub.s32 256, 256
          %385 = vsyncadd %s378, %s384
          %s386 = smul.addr %s382, 128
          %s387 = scalar_lea.hbm %s0, %s386
          %s388 = sshll.u32 %s381, 4
          %s389 = int_to_ptr.vmem [resolvable:$true] %s388
          %394 = dma.hbm_to_vmem [thread:$0]  %s387, 256, %s389, %s378, 128, 128, 8
        $region48: #{tpu_custom_call.1} parent=43 // pred_fallthru
          _
        // Predicated region
        $region49: #{tpu_custom_call.1} parent=43 // pred_check
          %p395 = pneg %p85
        $region50: #{tpu_custom_call.1} parent=43 // pred_check_branch
          %397 = sbr.rel (%p395) target = $region52
        $region51: #{tpu_custom_call.1} parent=43 // pred_region
          %s398 = sand.u32 %s27, 1
          %s399 = scalar_lea.sflag [#allocation6], %s398
          %s400 = sand.u32 %s75, 1
          %s401 = smul.addr %s400, 2
          %s402 = scalar_lea.vmem [#allocation5], %s401
          %s403 = smul.u32 2, %s34
          %s405 = ssub.s32 32, 32
          %406 = vsyncadd %s399, %s405
          %s407 = smul.addr %s403, 16
          %s408 = scalar_lea.hbm %s1, %s407
          %s409 = sshll.u32 %s402, 4
          %s410 = int_to_ptr.vmem [resolvable:$true] %s409
          %415 = dma.hbm_to_vmem [thread:$0]  %s408, 32, %s410, %s399, 16, 16, 1
        $region52: #{tpu_custom_call.1} parent=43 // pred_fallthru
          _
      $region44: #{tpu_custom_call.1} parent=5 // pred_fallthru
        _
      %p416 = scmp.le.s32.totalorder 1, %s27
      %p417 = scmp.lt.s32.totalorder %s27, 5
      %p418 = pnand %p416, %p417
      %p419 = pneg %p418
      // Predicated region
      $region53: #{tpu_custom_call.1} parent=5 // pred_check
        _
      $region54: #{tpu_custom_call.1} parent=5 // pred_check_branch
        %421 = sbr.rel (%p418) target = $region56
      $region55: #{tpu_custom_call.1} parent=5 // pred_region
        %s422 = ssub.s32 %s27, 1
        %s423 = sand.u32 %s52, 1
        %s424 = scalar_lea.sflag [#allocation3], %s423
        %s425 = sand.u32 %s52, 1
        %s426 = smul.addr %s425, 16
        %s427 = scalar_lea.vmem [#allocation2], %s426
        // Predicated region
        $region57: #{tpu_custom_call.1} parent=55 // pred_check
          %p428 = pneg %p65
        $region58: #{tpu_custom_call.1} parent=55 // pred_check_branch
          %430 = sbr.rel (%p428) target = $region60
        $region59: #{tpu_custom_call.1} parent=55 // pred_region
          %431 = dma.done %s424, 256
        $region60: #{tpu_custom_call.1} parent=55 // pred_fallthru
          _
        %s432 = sand.u32 %s32, 1
        %s433 = scalar_lea.sflag [#allocation6], %s432
        %s434 = sand.u32 %s78, 1
        %s435 = smul.addr %s434, 2
        %s436 = scalar_lea.vmem [#allocation5], %s435
        // Predicated region
        $region61: #{tpu_custom_call.1} parent=55 // pred_check
          %p437 = pneg %p91
        $region62: #{tpu_custom_call.1} parent=55 // pred_check_branch
          %439 = sbr.rel (%p437) target = $region64
        $region63: #{tpu_custom_call.1} parent=55 // pred_region
          %440 = dma.done %s433, 32
        $region64: #{tpu_custom_call.1} parent=55 // pred_fallthru
          _
        // Predicated region
        $region65: #{tpu_custom_call.1} parent=55 // pred_check
          %p441 = pneg %p112
        $region66: #{tpu_custom_call.1} parent=55 // pred_check_branch
          %443 = sbr.rel (%p441) target = $region68
        $region67: #{tpu_custom_call.1} parent=55 // pred_region
          %444 = dma.done [#allocation6], 6144
        $region68: #{tpu_custom_call.1} parent=55 // pred_fallthru
          _
        // Predicated region
        $region69: #{tpu_custom_call.1} parent=55 // pred_check
          %p445 = pneg %p133
        $region70: #{tpu_custom_call.1} parent=55 // pred_check_branch
          %447 = sbr.rel (%p445) target = $region72
        $region71: #{tpu_custom_call.1} parent=55 // pred_region
          %448 = dma.done [#allocation9], 96
        $region72: #{tpu_custom_call.1} parent=55 // pred_fallthru
          _
        // Predicated region
        $region73: #{tpu_custom_call.1} parent=55 // pred_check
          %p449 = pneg %p154
        $region74: #{tpu_custom_call.1} parent=55 // pred_check_branch
          %451 = sbr.rel (%p449) target = $region76
        $region75: #{tpu_custom_call.1} parent=55 // pred_region
          %452 = dma.done [#allocation9], 2048
        $region76: #{tpu_custom_call.1} parent=55 // pred_fallthru
          _
        // Predicated region
        $region77: #{tpu_custom_call.1} parent=55 // pred_check
          %p453 = pneg %p175
        $region78: #{tpu_custom_call.1} parent=55 // pred_check_branch
          %455 = sbr.rel (%p453) target = $region80
        $region79: #{tpu_custom_call.1} parent=55 // pred_region
          %456 = dma.done [#allocation12], 4096
        $region80: #{tpu_custom_call.1} parent=55 // pred_fallthru
          _
        // Predicated region
        $region81: #{tpu_custom_call.1} parent=55 // pred_check
          %p457 = pneg %p196
        $region82: #{tpu_custom_call.1} parent=55 // pred_check_branch
          %459 = sbr.rel (%p457) target = $region84
        $region83: #{tpu_custom_call.1} parent=55 // pred_region
          %460 = dma.done [#allocation12], 64
        $region84: #{tpu_custom_call.1} parent=55 // pred_fallthru
          _
        // Predicated region
        $region85: #{tpu_custom_call.1} parent=55 // pred_check
          %p461 = pneg %p217
        $region86: #{tpu_custom_call.1} parent=55 // pred_check_branch
          %463 = sbr.rel (%p461) target = $region88
        $region87: #{tpu_custom_call.1} parent=55 // pred_region
          %464 = dma.done [#allocation15], 4096
        $region88: #{tpu_custom_call.1} parent=55 // pred_fallthru
          _
        // Predicated region
        $region89: #{tpu_custom_call.1} parent=55 // pred_check
          %p465 = pneg %p238
        $region90: #{tpu_custom_call.1} parent=55 // pred_check_branch
          %467 = sbr.rel (%p465) target = $region92
        $region91: #{tpu_custom_call.1} parent=55 // pred_region
          %468 = dma.done [#allocation15], 256
        $region92: #{tpu_custom_call.1} parent=55 // pred_fallthru
          _
        %s469 = sand.u32 %s52, 1
        %s470 = scalar_lea.sflag [#allocation3], %s469
        %s471 = sand.u32 %s52, 1
        %s472 = smul.addr %s471, 16
        %s473 = scalar_lea.vmem [#allocation2], %s472
        %p474 = pneg %p65
        %p475 = pneg %p62
        %s476 = sand.u32 %s32, 1
        %s477 = scalar_lea.sflag [#allocation6], %s476
        %s478 = sand.u32 %s78, 1
        %s479 = smul.addr %s478, 2
        %s480 = scalar_lea.vmem [#allocation5], %s479
        %p481 = pneg %p91
        %p482 = pneg %p88
        %p483 = pneg %p112
        %p484 = pneg %p109
        %p485 = pneg %p133
        %p486 = pneg %p130
        %p487 = pneg %p154
        %p488 = pneg %p151
        %p489 = pneg %p175
        %p490 = pneg %p172
        %p491 = pneg %p196
        %p492 = pneg %p193
        %p493 = pneg %p217
        %p494 = pneg %p214
        %p495 = pneg %p238
        %p496 = pneg %p235
        %p497 = pneg %p264
        %p498 = pneg %p261
        %s499 = sand.u32 %s251, 1
        %s500 = scalar_lea.sflag [#allocation4], %s499
        %s501 = sand.u32 %s251, 1
        %s502 = smul.addr %s501, 16
        %s503 = scalar_lea.vmem [#allocation17], %s502
        %s504 = smul.u32 2, %s36
        %s505 = smul.u32 2, %s36
        %s506 = smul.u32 2, %s36
        %p508 = scmp.eq.s32.totalorder %s37, 0
        // Predicated region
        $region93: #{tpu_custom_call.1} parent=55 // pred_check
          %p509 = pneg %p508
        $region94: #{tpu_custom_call.1} parent=55 // pred_check_branch
          %511 = sbr.rel (%p509) target = $region96
        $region95: #{tpu_custom_call.1} parent=55 // pred_region
          %v512 = vld [vmem:[%s427] sm:$0xff]
          %v513 = vld [vmem:[%s427 + $0x8] sm:$0xff]
          %514 = vst [vmem:[%s503] sm:$0xff] %v512
          %515 = vst [vmem:[%s503 + $0x8] sm:$0xff] %v513
        $region96: #{tpu_custom_call.1} parent=55 // pred_fallthru
          _
        %v516 = vld [vmem:[%s503] sm:$0xff]
        %v517 = vld [vmem:[%s503 + $0x8] sm:$0xff]
        %s518 = smul.u32 %s37, 48
        %s519 = smul.addr %s518, 4
        %s520 = scalar_lea.vmem [#allocation7], %s519
        %v521 = vld [vmem:[%s520] sm:$0xff]
        %v522 = vld [vmem:[%s520 + $0x8] sm:$0xf]
        %v523 = vld [vmem:[%s520 + $0xc] sm:$0xff]
        %v524 = vld [vmem:[%s520 + $0x14] sm:$0xf]
        %v525 = vld [vmem:[%s520 + $0x18] sm:$0xff]
        %v526 = vld [vmem:[%s520 + $0x20] sm:$0xf]
        %v527 = vld [vmem:[%s520 + $0x24] sm:$0xff]
        %v528 = vld [vmem:[%s520 + $0x2c] sm:$0xf]
        %v529 = vld [vmem:[%s520 + $0x30] sm:$0xff]
        %v530 = vld [vmem:[%s520 + $0x38] sm:$0xf]
        %v531 = vld [vmem:[%s520 + $0x3c] sm:$0xff]
        %v532 = vld [vmem:[%s520 + $0x44] sm:$0xf]
        %v533 = vld [vmem:[%s520 + $0x48] sm:$0xff]
        %v534 = vld [vmem:[%s520 + $0x50] sm:$0xf]
        %v535 = vld [vmem:[%s520 + $0x54] sm:$0xff]
        %v536 = vld [vmem:[%s520 + $0x5c] sm:$0xf]
        %v537 = vld [vmem:[%s520 + $0x60] sm:$0xff]
        %v538 = vld [vmem:[%s520 + $0x68] sm:$0xf]
        %v539 = vld [vmem:[%s520 + $0x6c] sm:$0xff]
        %v540 = vld [vmem:[%s520 + $0x74] sm:$0xf]
        %v541 = vld [vmem:[%s520 + $0x78] sm:$0xff]
        %v542 = vld [vmem:[%s520 + $0x80] sm:$0xf]
        %v543 = vld [vmem:[%s520 + $0x84] sm:$0xff]
        %v544 = vld [vmem:[%s520 + $0x8c] sm:$0xf]
        %v545 = vld [vmem:[%s520 + $0x90] sm:$0xff]
        %v546 = vld [vmem:[%s520 + $0x98] sm:$0xf]
        %v547 = vld [vmem:[%s520 + $0x9c] sm:$0xff]
        %v548 = vld [vmem:[%s520 + $0xa4] sm:$0xf]
        %v549 = vld [vmem:[%s520 + $0xa8] sm:$0xff]
        %v550 = vld [vmem:[%s520 + $0xb0] sm:$0xf]
        %v551 = vld [vmem:[%s520 + $0xb4] sm:$0xff]
        %v552 = vld [vmem:[%s520 + $0xbc] sm:$0xf]
        %s553 = smul.u32 %s37, 3
        %s554 = scalar_lea.vmem [#allocation8], %s553
        %v555 = vld [vmem:[%s554] sm:$0x7]
        %s556 = smul.u32 %s37, 16
        %s557 = smul.addr %s556, 4
        %s558 = scalar_lea.vmem [#allocation10], %s557
        %v559 = vld [vmem:[%s558] sm:$0xf]
        %v560 = vld [vmem:[%s558 + $0x4] sm:$0xf]
        %v561 = vld [vmem:[%s558 + $0x8] sm:$0xf]
        %v562 = vld [vmem:[%s558 + $0xc] sm:$0xf]
        %v563 = vld [vmem:[%s558 + $0x10] sm:$0xf]
        %v564 = vld [vmem:[%s558 + $0x14] sm:$0xf]
        %v565 = vld [vmem:[%s558 + $0x18] sm:$0xf]
        %v566 = vld [vmem:[%s558 + $0x1c] sm:$0xf]
        %v567 = vld [vmem:[%s558 + $0x20] sm:$0xf]
        %v568 = vld [vmem:[%s558 + $0x24] sm:$0xf]
        %v569 = vld [vmem:[%s558 + $0x28] sm:$0xf]
        %v570 = vld [vmem:[%s558 + $0x2c] sm:$0xf]
        %v571 = vld [vmem:[%s558 + $0x30] sm:$0xf]
        %v572 = vld [vmem:[%s558 + $0x34] sm:$0xf]
        %v573 = vld [vmem:[%s558 + $0x38] sm:$0xf]
        %v574 = vld [vmem:[%s558 + $0x3c] sm:$0xf]
        %s575 = smul.u32 %s37, 32
        %s576 = smul.addr %s575, 4
        %s577 = scalar_lea.vmem [#allocation11], %s576
        %v578 = vld [vmem:[%s577] sm:$0xff]
        %v579 = vld [vmem:[%s577 + $0x8] sm:$0xff]
        %v580 = vld [vmem:[%s577 + $0x10] sm:$0xff]
        %v581 = vld [vmem:[%s577 + $0x18] sm:$0xff]
        %v582 = vld [vmem:[%s577 + $0x20] sm:$0xff]
        %v583 = vld [vmem:[%s577 + $0x28] sm:$0xff]
        %v584 = vld [vmem:[%s577 + $0x30] sm:$0xff]
        %v585 = vld [vmem:[%s577 + $0x38] sm:$0xff]
        %v586 = vld [vmem:[%s577 + $0x40] sm:$0xff]
        %v587 = vld [vmem:[%s577 + $0x48] sm:$0xff]
        %v588 = vld [vmem:[%s577 + $0x50] sm:$0xff]
        %v589 = vld [vmem:[%s577 + $0x58] sm:$0xff]
        %v590 = vld [vmem:[%s577 + $0x60] sm:$0xff]
        %v591 = vld [vmem:[%s577 + $0x68] sm:$0xff]
        %v592 = vld [vmem:[%s577 + $0x70] sm:$0xff]
        %v593 = vld [vmem:[%s577 + $0x78] sm:$0xff]
        %s594 = smul.u32 %s37, 2
        %s595 = scalar_lea.vmem [#allocation13], %s594
        %v596 = vld [vmem:[%s595] sm:$0x3]
        %s597 = smul.addr %s575, 4
        %s598 = scalar_lea.vmem [#allocation14], %s597
        %v599 = vld [vmem:[%s598] sm:$0xf]
        %v600 = vld [vmem:[%s598 + $0x4] sm:$0xf]
        %v601 = vld [vmem:[%s598 + $0x8] sm:$0xf]
        %v602 = vld [vmem:[%s598 + $0xc] sm:$0xf]
        %v603 = vld [vmem:[%s598 + $0x10] sm:$0xf]
        %v604 = vld [vmem:[%s598 + $0x14] sm:$0xf]
        %v605 = vld [vmem:[%s598 + $0x18] sm:$0xf]
        %v606 = vld [vmem:[%s598 + $0x1c] sm:$0xf]
        %v607 = vld [vmem:[%s598 + $0x20] sm:$0xf]
        %v608 = vld [vmem:[%s598 + $0x24] sm:$0xf]
        %v609 = vld [vmem:[%s598 + $0x28] sm:$0xf]
        %v610 = vld [vmem:[%s598 + $0x2c] sm:$0xf]
        %v611 = vld [vmem:[%s598 + $0x30] sm:$0xf]
        %v612 = vld [vmem:[%s598 + $0x34] sm:$0xf]
        %v613 = vld [vmem:[%s598 + $0x38] sm:$0xf]
        %v614 = vld [vmem:[%s598 + $0x3c] sm:$0xf]
        %v615 = vld [vmem:[%s598 + $0x40] sm:$0xf]
        %v616 = vld [vmem:[%s598 + $0x44] sm:$0xf]
        %v617 = vld [vmem:[%s598 + $0x48] sm:$0xf]
        %v618 = vld [vmem:[%s598 + $0x4c] sm:$0xf]
        %v619 = vld [vmem:[%s598 + $0x50] sm:$0xf]
        %v620 = vld [vmem:[%s598 + $0x54] sm:$0xf]
        %v621 = vld [vmem:[%s598 + $0x58] sm:$0xf]
        %v622 = vld [vmem:[%s598 + $0x5c] sm:$0xf]
        %v623 = vld [vmem:[%s598 + $0x60] sm:$0xf]
        %v624 = vld [vmem:[%s598 + $0x64] sm:$0xf]
        %v625 = vld [vmem:[%s598 + $0x68] sm:$0xf]
        %v626 = vld [vmem:[%s598 + $0x6c] sm:$0xf]
        %v627 = vld [vmem:[%s598 + $0x70] sm:$0xf]
        %v628 = vld [vmem:[%s598 + $0x74] sm:$0xf]
        %v629 = vld [vmem:[%s598 + $0x78] sm:$0xf]
        %v630 = vld [vmem:[%s598 + $0x7c] sm:$0xf]
        %s631 = smul.u32 %s37, 8
        %s632 = scalar_lea.vmem [#allocation16], %s631
        %v633 = vld [vmem:[%s632] sm:$0x3f]
        %v634 = vpack.c.bf16 %v517, %v516
        %v636 = vlaneseq
        %v637 = vshrl.u32 %v636, 7
        %v638 = vsub.s32 0, %v637
        %v639 = vrot.slane %v555, %v638
        %v640 = vlaneseq
        %v641 = vshrl.u32 %v640, 7
        %v642 = vsub.s32 1, %v641
        %v643 = vrot.slane %v555, %v642
        %v644 = vlaneseq
        %v645 = vshrl.u32 %v644, 7
        %v646 = vsub.s32 2, %v645
        %v647 = vrot.slane %v555, %v646
        %v683 = vunpack.c.l.b16 %v521
        %v684 = vunpack.c.h.b16 %v521
        %v685 = vunpack.c.l.b16 %v522
        %v686 = vunpack.c.l.b16 %v523
        %v687 = vunpack.c.h.b16 %v523
        %v688 = vunpack.c.l.b16 %v524
        %v689 = vunpack.c.l.b16 %v525
        %v690 = vunpack.c.h.b16 %v525
        %v691 = vunpack.c.l.b16 %v526
        %v692 = vunpack.c.l.b16 %v527
        %v693 = vunpack.c.h.b16 %v527
        %v694 = vunpack.c.l.b16 %v528
        %v695 = vunpack.c.l.b16 %v529
        %v696 = vunpack.c.h.b16 %v529
        %v697 = vunpack.c.l.b16 %v530
        %v698 = vunpack.c.l.b16 %v531
        %v699 = vunpack.c.h.b16 %v531
        %v700 = vunpack.c.l.b16 %v532
        %v701 = vunpack.c.l.b16 %v533
        %v702 = vunpack.c.h.b16 %v533
        %v703 = vunpack.c.l.b16 %v534
        %v704 = vunpack.c.l.b16 %v535
        %v705 = vunpack.c.h.b16 %v535
        %v706 = vunpack.c.l.b16 %v536
        %v707 = vunpack.c.l.b16 %v537
        %v708 = vunpack.c.h.b16 %v537
        %v709 = vunpack.c.l.b16 %v538
        %v710 = vunpack.c.l.b16 %v539
        %v711 = vunpack.c.h.b16 %v539
        %v712 = vunpack.c.l.b16 %v540
        %v713 = vunpack.c.l.b16 %v541
        %v714 = vunpack.c.h.b16 %v541
        %v715 = vunpack.c.l.b16 %v542
        %v716 = vunpack.c.l.b16 %v543
        %v717 = vunpack.c.h.b16 %v543
        %v718 = vunpack.c.l.b16 %v544
        %v719 = vunpack.c.l.b16 %v545
        %v720 = vunpack.c.h.b16 %v545
        %v721 = vunpack.c.l.b16 %v546
        %v722 = vunpack.c.l.b16 %v547
        %v723 = vunpack.c.h.b16 %v547
        %v724 = vunpack.c.l.b16 %v548
        %v725 = vunpack.c.l.b16 %v549
        %v726 = vunpack.c.h.b16 %v549
        %v727 = vunpack.c.l.b16 %v550
        %v728 = vunpack.c.l.b16 %v551
        %v729 = vunpack.c.h.b16 %v551
        %v730 = vunpack.c.l.b16 %v552
        %v731 = vpack.c.b16 %v686, %v683
        %v732 = vpack.c.b16 %v687, %v684
        %v733 = vpack.c.b16 %v688, %v685
        %v734 = vpack.c.b16 %v692, %v689
        %v735 = vpack.c.b16 %v693, %v690
        %v736 = vpack.c.b16 %v694, %v691
        %v737 = vpack.c.b16 %v698, %v695
        %v738 = vpack.c.b16 %v699, %v696
        %v739 = vpack.c.b16 %v700, %v697
        %v740 = vpack.c.b16 %v704, %v701
        %v741 = vpack.c.b16 %v705, %v702
        %v742 = vpack.c.b16 %v706, %v703
        %v743 = vpack.c.b16 %v710, %v707
        %v744 = vpack.c.b16 %v711, %v708
        %v745 = vpack.c.b16 %v712, %v709
        %v746 = vpack.c.b16 %v716, %v713
        %v747 = vpack.c.b16 %v717, %v714
        %v748 = vpack.c.b16 %v718, %v715
        %v749 = vpack.c.b16 %v722, %v719
        %v750 = vpack.c.b16 %v723, %v720
        %v751 = vpack.c.b16 %v724, %v721
        %v752 = vpack.c.b16 %v728, %v725
        %v753 = vpack.c.b16 %v729, %v726
        %v754 = vpack.c.b16 %v730, %v727
        %779 = vmatprep.subr.bf16.mxu0 %v732
        %780 = vmatpush1.bf16.msra.mxu0 %v731
        %781 = vmatprep.subr.bf16.mxu0 %v735
        %782 = vmatpush1.bf16.msra.mxu0 %v734
        %783 = vmatprep.subr.bf16.mxu0 %v738
        %784 = vmatpush1.bf16.msra.mxu0 %v737
        %785 = vmatprep.subr.bf16.mxu0 %v741
        %786 = vmatpush1.bf16.msra.mxu0 %v740
        %787 = vmatprep.subr.bf16.mxu0 %v744
        %788 = vmatpush1.bf16.msra.mxu0 %v743
        %789 = vmatprep.subr.bf16.mxu0 %v747
        %790 = vmatpush1.bf16.msra.mxu0 %v746
        %791 = vmatprep.subr.bf16.mxu0 %v750
        %792 = vmatpush1.bf16.msra.mxu0 %v749
        %793 = vmatprep.subr.bf16.mxu0 %v753
        %794 = vmatpush1.bf16.msra.mxu0 %v752
        %795 = vmatprep.subr.bf16.mxu0 0
        %796 = vmatpush1.bf16.msra.mxu0 0
        %797 = vmatprep.subr.bf16.mxu0 0
        %798 = vmatpush1.bf16.msra.mxu0 0
        %799 = vmatprep.subr.bf16.mxu0 0
        %800 = vmatpush1.bf16.msra.mxu0 0
        %801 = vmatprep.subr.bf16.mxu0 0
        %802 = vmatpush1.bf16.msra.mxu0 0
        %803 = vmatprep.subr.bf16.mxu0 0
        %804 = vmatpush1.bf16.msra.mxu0 0
        %805 = vmatprep.subr.bf16.mxu0 0
        %806 = vmatpush1.bf16.msra.mxu0 0
        %807 = vmatprep.subr.bf16.mxu0 0
        %808 = vmatpush1.bf16.msra.mxu0 0
        %809 = vmatprep.subr.bf16.mxu0 0
        %810 = vmatpush1.bf16.msra.mxu0 0
        %811 = vmatprep.mubr.bf16.mxu0 0
        %812 = vmatmul.mubr.bf16.gmra.mrb[0].mxu0 %v634
        %v813 = vpop.f32.mrb[0].mxu0
        %v814 = vadd.f32 %v639, %v813
        %v815 = vpop.f32.mrb[0].mxu0
        %v816 = vadd.f32 %v643, %v815
        %v817 = vpop.f32.mrb[0].mxu0
        %v818 = vadd.f32 %v639, %v817
        %v819 = vpop.f32.mrb[0].mxu0
        %v820 = vadd.f32 %v643, %v819
        %821 = vdwg.mxu0
        %822 = vmatprep.subr.bf16.mxu0 0
        %823 = vmatpush1.bf16.msra.mxu0 %v733
        %824 = vmatprep.subr.bf16.mxu0 0
        %825 = vmatpush1.bf16.msra.mxu0 %v736
        %826 = vmatprep.subr.bf16.mxu0 0
        %827 = vmatpush1.bf16.msra.mxu0 %v739
        %828 = vmatprep.subr.bf16.mxu0 0
        %829 = vmatpush1.bf16.msra.mxu0 %v742
        %830 = vmatprep.subr.bf16.mxu0 0
        %831 = vmatpush1.bf16.msra.mxu0 %v745
        %832 = vmatprep.subr.bf16.mxu0 0
        %833 = vmatpush1.bf16.msra.mxu0 %v748
        %834 = vmatprep.subr.bf16.mxu0 0
        %835 = vmatpush1.bf16.msra.mxu0 %v751
        %836 = vmatprep.subr.bf16.mxu0 0
        %837 = vmatpush1.bf16.msra.mxu0 %v754
        %838 = vmatprep.subr.bf16.mxu0 0
        %839 = vmatpush1.bf16.msra.mxu0 0
        %840 = vmatprep.subr.bf16.mxu0 0
        %841 = vmatpush1.bf16.msra.mxu0 0
        %842 = vmatprep.subr.bf16.mxu0 0
        %843 = vmatpush1.bf16.msra.mxu0 0
        %844 = vmatprep.subr.bf16.mxu0 0
        %845 = vmatpush1.bf16.msra.mxu0 0
        %846 = vmatprep.subr.bf16.mxu0 0
        %847 = vmatpush1.bf16.msra.mxu0 0
        %848 = vmatprep.subr.bf16.mxu0 0
        %849 = vmatpush1.bf16.msra.mxu0 0
        %850 = vmatprep.subr.bf16.mxu0 0
        %851 = vmatpush1.bf16.msra.mxu0 0
        %852 = vmatprep.subr.bf16.mxu0 0
        %853 = vmatpush1.bf16.msra.mxu0 0
        %854 = vmatprep.mubr.bf16.mxu0 0
        %855 = vmatmul.mubr.bf16.gmra.mrb[0].mxu0 %v634
        %v856 = vpop.f32.mrb[0].mxu0
        %v857 = vadd.f32 %v647, %v856
        %v858 = vpop.f32.mrb[0].mxu0
        %v859 = vpop.f32.mrb[0].mxu0
        %v860 = vadd.f32 %v647, %v859
        %v861 = vpop.f32.mrb[0].mxu0
        %862 = vdwg.mxu0
        %v863 = vpack.c.bf16 %v814, %v814
        %v864 = vpack.c.bf16 %v818, %v818
        %v865 = vpack.c.bf16 %v816, %v816
        %v866 = vpack.c.bf16 %v820, %v820
        %v867 = vpack.c.bf16 %v857, %v857
        %v868 = vpack.c.bf16 %v860, %v860
        %v869 = vld [vmem:[%s436] sm:$0x1]
        %v870 = vld [vmem:[%s436 + $0x1] sm:$0x1]
        %v873 = vlaneseq
        %v874 = vshrl.u32 %v873, 7
        %v875 = vsub.s32 0, %v874
        %v876 = vrot.slane %v869, %v875
        %v877 = vlaneseq
        %v878 = vshrl.u32 %v877, 7
        %v879 = vsub.s32 0, %v878
        %v880 = vrot.slane %v870, %v879
        %vm883 = vcmask 261120
        %v885 = vsel %vm883, %v863, 0
        %v888 = vsel %vm883, %v865, 0
        %890 = vmatprep.subr.bf16.mxu0 0
        %891 = vmatpush1.bf16.xpose.msra.mxu0 %v888
        %892 = vmatprep.subr.bf16.mxu0 0
        %893 = vmatpush1.bf16.xpose.msra.mxu0 0
        %894 = vmatprep.subr.bf16.mxu0 0
        %895 = vmatpush1.bf16.xpose.msra.mxu0 0
        %896 = vmatprep.subr.bf16.mxu0 0
        %897 = vmatpush1.bf16.xpose.msra.mxu0 0
        %898 = vmatprep.subr.bf16.mxu0 0
        %899 = vmatpush1.bf16.xpose.msra.mxu0 0
        %900 = vmatprep.subr.bf16.mxu0 0
        %901 = vmatpush1.bf16.xpose.msra.mxu0 0
        %902 = vmatprep.subr.bf16.mxu0 0
        %903 = vmatpush1.bf16.xpose.msra.mxu0 0
        %904 = vmatprep.subr.bf16.mxu0 0
        %905 = vmatpush1.bf16.xpose.msra.mxu0 0
        %906 = vmatprep.subr.bf16.mxu0 0
        %907 = vmatpush1.bf16.xpose.msra.mxu0 0
        %908 = vmatprep.subr.bf16.mxu0 0
        %909 = vmatpush1.bf16.xpose.msra.mxu0 0
        %910 = vmatprep.subr.bf16.mxu0 0
        %911 = vmatpush1.bf16.xpose.msra.mxu0 0
        %912 = vmatprep.subr.bf16.mxu0 0
        %913 = vmatpush1.bf16.xpose.msra.mxu0 0
        %914 = vmatprep.subr.bf16.mxu0 0
        %915 = vmatpush1.bf16.xpose.msra.mxu0 0
        %916 = vmatprep.subr.bf16.mxu0 0
        %917 = vmatpush1.bf16.xpose.msra.mxu0 0
        %918 = vmatprep.subr.bf16.mxu0 0
        %919 = vmatpush1.bf16.xpose.msra.mxu0 0
        %920 = vmatprep.subr.bf16.mxu0 0
        %921 = vmatpush1.bf16.xpose.msra.mxu0 0
        %922 = vmatprep.mubr.bf16.mxu0 0
        %923 = vmatmul.mubr.bf16.gmra.mrb[0].mxu0 %v885
        %v924 = vpop.f32.mrb[0].mxu0
        %v925 = vadd.f32 %v876, %v924
        %v926 = vpop.f32.mrb[0].mxu0
        %v927 = vpop.f32.mrb[0].mxu0
        %v928 = vpop.f32.mrb[0].mxu0
        %929 = vdwg.mxu0
        %v931 = vsel %vm883, %v864, 0
        %v934 = vsel %vm883, %v866, 0
        %936 = vmatprep.subr.bf16.mxu0 0
        %937 = vmatpush1.bf16.xpose.msra.mxu0 %v934
        %938 = vmatprep.subr.bf16.mxu0 0
        %939 = vmatpush1.bf16.xpose.msra.mxu0 0
        %940 = vmatprep.subr.bf16.mxu0 0
        %941 = vmatpush1.bf16.xpose.msra.mxu0 0
        %942 = vmatprep.subr.bf16.mxu0 0
        %943 = vmatpush1.bf16.xpose.msra.mxu0 0
        %944 = vmatprep.subr.bf16.mxu0 0
        %945 = vmatpush1.bf16.xpose.msra.mxu0 0
        %946 = vmatprep.subr.bf16.mxu0 0
        %947 = vmatpush1.bf16.xpose.msra.mxu0 0
        %948 = vmatprep.subr.bf16.mxu0 0
        %949 = vmatpush1.bf16.xpose.msra.mxu0 0
        %950 = vmatprep.subr.bf16.mxu0 0
        %951 = vmatpush1.bf16.xpose.msra.mxu0 0
        %952 = vmatprep.subr.bf16.mxu0 0
        %953 = vmatpush1.bf16.xpose.msra.mxu0 0
        %954 = vmatprep.subr.bf16.mxu0 0
        %955 = vmatpush1.bf16.xpose.msra.mxu0 0
        %956 = vmatprep.subr.bf16.mxu0 0
        %957 = vmatpush1.bf16.xpose.msra.mxu0 0
        %958 = vmatprep.subr.bf16.mxu0 0
        %959 = vmatpush1.bf16.xpose.msra.mxu0 0
        %960 = vmatprep.subr.bf16.mxu0 0
        %961 = vmatpush1.bf16.xpose.msra.mxu0 0
        %962 = vmatprep.subr.bf16.mxu0 0
        %963 = vmatpush1.bf16.xpose.msra.mxu0 0
        %964 = vmatprep.subr.bf16.mxu0 0
        %965 = vmatpush1.bf16.xpose.msra.mxu0 0
        %966 = vmatprep.subr.bf16.mxu0 0
        %967 = vmatpush1.bf16.xpose.msra.mxu0 0
        %968 = vmatprep.mubr.bf16.mxu0 0
        %969 = vmatmul.mubr.bf16.gmra.mrb[0].mxu0 %v931
        %v970 = vpop.f32.mrb[0].mxu0
        %v971 = vadd.f32 %v880, %v970
        %v972 = vpop.f32.mrb[0].mxu0
        %v973 = vpop.f32.mrb[0].mxu0
        %v974 = vpop.f32.mrb[0].mxu0
        %975 = vdwg.mxu0
        %vm976 = vcmask 64512
        %v977 = vsel %vm976, %v925, -inf
        %978 = vmax.xlane.f32.xlu0 %v977
        %v979 = vpop.xlane.xlu0 %978
        %v980 = vsel %vm976, %v971, -inf
        %981 = vmax.xlane.f32.xlu0 %v980
        %v982 = vpop.xlane.xlu0 %981
        %v983 = vsub.f32 %v925, %v979
        %v984 = vsub.f32 %v971, %v982
        %v985 = vmul.f32 %v983, 1.442695
        %v986 = vpow.pop %v985
        %v987 = vmul.f32 %v984, 1.442695
        %v988 = vpow.pop %v987
        %v989 = vsel %vm976, %v986, 0.0
        %990 = vadd.xlane.f32.xlu0 %v989
        %v991 = vpop.xlane.xlu0 %990
        %v992 = vsel %vm976, %v988, 0.0
        %993 = vadd.xlane.f32.xlu0 %v992
        %v994 = vpop.xlane.xlu0 %993
        %v995 = vrcp.pop %v991
        %v996 = vrcp.pop %v994
        %v997 = vmul.f32 %v986, %v995
        %v998 = vmul.f32 %v988, %v996
        %v999 = vpack.c.bf16 %v997, %v997
        %v1000 = vpack.c.bf16 %v998, %v998
        %v1002 = vsel %vm976, %v999, 0
        %vm1004 = vcmask 1043456
        %v1006 = vsel %vm1004, %v867, 0
        %1008 = vmatprep.subr.bf16.mxu0 0
        %1009 = vmatpush1.bf16.msra.mxu0 %v1006
        %1010 = vmatprep.subr.bf16.mxu0 0
        %1011 = vmatpush1.bf16.msra.mxu0 0
        %1012 = vmatprep.subr.bf16.mxu0 0
        %1013 = vmatpush1.bf16.msra.mxu0 0
        %1014 = vmatprep.subr.bf16.mxu0 0
        %1015 = vmatpush1.bf16.msra.mxu0 0
        %1016 = vmatprep.subr.bf16.mxu0 0
        %1017 = vmatpush1.bf16.msra.mxu0 0
        %1018 = vmatprep.subr.bf16.mxu0 0
        %1019 = vmatpush1.bf16.msra.mxu0 0
        %1020 = vmatprep.subr.bf16.mxu0 0
        %1021 = vmatpush1.bf16.msra.mxu0 0
        %1022 = vmatprep.subr.bf16.mxu0 0
        %1023 = vmatpush1.bf16.msra.mxu0 0
        %1024 = vmatprep.subr.bf16.mxu0 0
        %1025 = vmatpush1.bf16.msra.mxu0 0
        %1026 = vmatprep.subr.bf16.mxu0 0
        %1027 = vmatpush1.bf16.msra.mxu0 0
        %1028 = vmatprep.subr.bf16.mxu0 0
        %1029 = vmatpush1.bf16.msra.mxu0 0
        %1030 = vmatprep.subr.bf16.mxu0 0
        %1031 = vmatpush1.bf16.msra.mxu0 0
        %1032 = vmatprep.subr.bf16.mxu0 0
        %1033 = vmatpush1.bf16.msra.mxu0 0
        %1034 = vmatprep.subr.bf16.mxu0 0
        %1035 = vmatpush1.bf16.msra.mxu0 0
        %1036 = vmatprep.subr.bf16.mxu0 0
        %1037 = vmatpush1.bf16.msra.mxu0 0
        %1038 = vmatprep.subr.bf16.mxu0 0
        %1039 = vmatpush1.bf16.msra.mxu0 0
        %1040 = vmatprep.mubr.bf16.mxu0 0
        %1041 = vmatmul.mubr.bf16.gmra.mrb[0].mxu0 %v1002
        %v1042 = vpop.f32.mrb[0].mxu0
        %v1043 = vadd.f32 0.0, %v1042
        %v1044 = vpop.f32.mrb[0].mxu0
        %v1045 = vpop.f32.mrb[0].mxu0
        %v1046 = vpop.f32.mrb[0].mxu0
        %1047 = vdwg.mxu0
        %v1049 = vsel %vm976, %v1000, 0
        %v1052 = vsel %vm1004, %v868, 0
        %1054 = vmatprep.subr.bf16.mxu0 0
        %1055 = vmatpush1.bf16.msra.mxu0 %v1052
        %1056 = vmatprep.subr.bf16.mxu0 0
        %1057 = vmatpush1.bf16.msra.mxu0 0
        %1058 = vmatprep.subr.bf16.mxu0 0
        %1059 = vmatpush1.bf16.msra.mxu0 0
        %1060 = vmatprep.subr.bf16.mxu0 0
        %1061 = vmatpush1.bf16.msra.mxu0 0
        %1062 = vmatprep.subr.bf16.mxu0 0
        %1063 = vmatpush1.bf16.msra.mxu0 0
        %1064 = vmatprep.subr.bf16.mxu0 0
        %1065 = vmatpush1.bf16.msra.mxu0 0
        %1066 = vmatprep.subr.bf16.mxu0 0
        %1067 = vmatpush1.bf16.msra.mxu0 0
        %1068 = vmatprep.subr.bf16.mxu0 0
        %1069 = vmatpush1.bf16.msra.mxu0 0
        %1070 = vmatprep.subr.bf16.mxu0 0
        %1071 = vmatpush1.bf16.msra.mxu0 0
        %1072 = vmatprep.subr.bf16.mxu0 0
        %1073 = vmatpush1.bf16.msra.mxu0 0
        %1074 = vmatprep.subr.bf16.mxu0 0
        %1075 = vmatpush1.bf16.msra.mxu0 0
        %1076 = vmatprep.subr.bf16.mxu0 0
        %1077 = vmatpush1.bf16.msra.mxu0 0
        %1078 = vmatprep.subr.bf16.mxu0 0
        %1079 = vmatpush1.bf16.msra.mxu0 0
        %1080 = vmatprep.subr.bf16.mxu0 0
        %1081 = vmatpush1.bf16.msra.mxu0 0
        %1082 = vmatprep.subr.bf16.mxu0 0
        %1083 = vmatpush1.bf16.msra.mxu0 0
        %1084 = vmatprep.subr.bf16.mxu0 0
        %1085 = vmatpush1.bf16.msra.mxu0 0
        %1086 = vmatprep.mubr.bf16.mxu0 0
        %1087 = vmatmul.mubr.bf16.gmra.mrb[0].mxu0 %v1049
        %v1088 = vpop.f32.mrb[0].mxu0
        %v1089 = vadd.f32 0.0, %v1088
        %v1090 = vpop.f32.mrb[0].mxu0
        %v1091 = vpop.f32.mrb[0].mxu0
        %v1092 = vpop.f32.mrb[0].mxu0
        %1093 = vdwg.mxu0
        %v1094 = vpack.c.bf16 %v1089, %v1043
        %1096 = vrot.lane.b32.xlu0 %v863, 96
        %v1097 = vpop.permute.xlu0 %1096
        %1099 = vrot.lane.b32.xlu0 %v865, 96
        %v1100 = vpop.permute.xlu0 %1099
        %v1102 = vsel %vm883, %v1097, 0
        %v1105 = vsel %vm883, %v1100, 0
        %1107 = vmatprep.subr.bf16.mxu0 0
        %1108 = vmatpush1.bf16.xpose.msra.mxu0 %v1105
        %1109 = vmatprep.subr.bf16.mxu0 0
        %1110 = vmatpush1.bf16.xpose.msra.mxu0 0
        %1111 = vmatprep.subr.bf16.mxu0 0
        %1112 = vmatpush1.bf16.xpose.msra.mxu0 0
        %1113 = vmatprep.subr.bf16.mxu0 0
        %1114 = vmatpush1.bf16.xpose.msra.mxu0 0
        %1115 = vmatprep.subr.bf16.mxu0 0
        %1116 = vmatpush1.bf16.xpose.msra.mxu0 0
        %1117 = vmatprep.subr.bf16.mxu0 0
        %1118 = vmatpush1.bf16.xpose.msra.mxu0 0
        %1119 = vmatprep.subr.bf16.mxu0 0
        %1120 = vmatpush1.bf16.xpose.msra.mxu0 0
        %1121 = vmatprep.subr.bf16.mxu0 0
        %1122 = vmatpush1.bf16.xpose.msra.mxu0 0
        %1123 = vmatprep.subr.bf16.mxu0 0
        %1124 = vmatpush1.bf16.xpose.msra.mxu0 0
        %1125 = vmatprep.subr.bf16.mxu0 0
        %1126 = vmatpush1.bf16.xpose.msra.mxu0 0
        %1127 = vmatprep.subr.bf16.mxu0 0
        %1128 = vmatpush1.bf16.xpose.msra.mxu0 0
        %1129 = vmatprep.subr.bf16.mxu0 0
        %1130 = vmatpush1.bf16.xpose.msra.mxu0 0
        %1131 = vmatprep.subr.bf16.mxu0 0
        %1132 = vmatpush1.bf16.xpose.msra.mxu0 0
        %1133 = vmatprep.subr.bf16.mxu0 0
        %1134 = vmatpush1.bf16.xpose.msra.mxu0 0
        %1135 = vmatprep.subr.bf16.mxu0 0
        %1136 = vmatpush1.bf16.xpose.msra.mxu0 0
        %1137 = vmatprep.subr.bf16.mxu0 0
        %1138 = vmatpush1.bf16.xpose.msra.mxu0 0
        %1139 = vmatprep.mubr.bf16.mxu0 0
        %1140 = vmatmul.mubr.bf16.gmra.mrb[0].mxu0 %v1102
        %v1141 = vpop.f32.mrb[0].mxu0
        %v1142 = vadd.f32 %v876, %v1141
        %v1143 = vpop.f32.mrb[0].mxu0
        %v1144 = vpop.f32.mrb[0].mxu0
        %v1145 = vpop.f32.mrb[0].mxu0
        %1146 = vdwg.mxu0
        %1148 = vrot.lane.b32.xlu0 %v864, 96
        %v1149 = vpop.permute.xlu0 %1148
        %1151 = vrot.lane.b32.xlu0 %v866, 96
        %v1152 = vpop.permute.xlu0 %1151
        %v1154 = vsel %vm883, %v1149, 0
        %v1157 = vsel %vm883, %v1152, 0
        %1159 = vmatprep.subr.bf16.mxu0 0
        %1160 = vmatpush1.bf16.xpose.msra.mxu0 %v1157
        %1161 = vmatprep.subr.bf16.mxu0 0
        %1162 = vmatpush1.bf16.xpose.msra.mxu0 0
        %1163 = vmatprep.subr.bf16.mxu0 0
        %1164 = vmatpush1.bf16.xpose.msra.mxu0 0
        %1165 = vmatprep.subr.bf16.mxu0 0
        %1166 = vmatpush1.bf16.xpose.msra.mxu0 0
        %1167 = vmatprep.subr.bf16.mxu0 0
        %1168 = vmatpush1.bf16.xpose.msra.mxu0 0
        %1169 = vmatprep.subr.bf16.mxu0 0
        %1170 = vmatpush1.bf16.xpose.msra.mxu0 0
        %1171 = vmatprep.subr.bf16.mxu0 0
        %1172 = vmatpush1.bf16.xpose.msra.mxu0 0
        %1173 = vmatprep.subr.bf16.mxu0 0
        %1174 = vmatpush1.bf16.xpose.msra.mxu0 0
        %1175 = vmatprep.subr.bf16.mxu0 0
        %1176 = vmatpush1.bf16.xpose.msra.mxu0 0
        %1177 = vmatprep.subr.bf16.mxu0 0
        %1178 = vmatpush1.bf16.xpose.msra.mxu0 0
        %1179 = vmatprep.subr.bf16.mxu0 0
        %1180 = vmatpush1.bf16.xpose.msra.mxu0 0
        %1181 = vmatprep.subr.bf16.mxu0 0
        %1182 = vmatpush1.bf16.xpose.msra.mxu0 0
        %1183 = vmatprep.subr.bf16.mxu0 0
        %1184 = vmatpush1.bf16.xpose.msra.mxu0 0
        %1185 = vmatprep.subr.bf16.mxu0 0
        %1186 = vmatpush1.bf16.xpose.msra.mxu0 0
        %1187 = vmatprep.subr.bf16.mxu0 0
        %1188 = vmatpush1.bf16.xpose.msra.mxu0 0
        %1189 = vmatprep.subr.bf16.mxu0 0
        %1190 = vmatpush1.bf16.xpose.msra.mxu0 0
        %1191 = vmatprep.mubr.bf16.mxu0 0
        %1192 = vmatmul.mubr.bf16.gmra.mrb[0].mxu0 %v1154
        %v1193 = vpop.f32.mrb[0].mxu0
        %v1194 = vadd.f32 %v880, %v1193
        %v1195 = vpop.f32.mrb[0].mxu0
        %v1196 = vpop.f32.mrb[0].mxu0
        %v1197 = vpop.f32.mrb[0].mxu0
        %1198 = vdwg.mxu0
        %v1199 = vsel %vm976, %v1142, -inf
        %1200 = vmax.xlane.f32.xlu0 %v1199
        %v1201 = vpop.xlane.xlu0 %1200
        %v1202 = vsel %vm976, %v1194, -inf
        %1203 = vmax.xlane.f32.xlu0 %v1202
        %v1204 = vpop.xlane.xlu0 %1203
        %v1205 = vsub.f32 %v1142, %v1201
        %v1206 = vsub.f32 %v1194, %v1204
        %v1207 = vmul.f32 %v1205, 1.442695
        %v1208 = vpow.pop %v1207
        %v1209 = vmul.f32 %v1206, 1.442695
        %v1210 = vpow.pop %v1209
        %v1211 = vsel %vm976, %v1208, 0.0
        %1212 = vadd.xlane.f32.xlu0 %v1211
        %v1213 = vpop.xlane.xlu0 %1212
        %v1214 = vsel %vm976, %v1210, 0.0
        %1215 = vadd.xlane.f32.xlu0 %v1214
        %v1216 = vpop.xlane.xlu0 %1215
        %v1217 = vrcp.pop %v1213
        %v1218 = vrcp.pop %v1216
        %v1219 = vmul.f32 %v1208, %v1217
        %v1220 = vmul.f32 %v1210, %v1218
        %v1221 = vpack.c.bf16 %v1219, %v1219
        %v1222 = vpack.c.bf16 %v1220, %v1220
        %1224 = vrot.lane.b32.xlu0 %v867, 96
        %v1225 = vpop.permute.xlu0 %1224
        %v1227 = vsel %vm976, %v1221, 0
        %v1230 = vsel %vm1004, %v1225, 0
        %1232 = vmatprep.subr.bf16.mxu0 0
        %1233 = vmatpush1.bf16.msra.mxu0 %v1230
        %1234 = vmatprep.subr.bf16.mxu0 0
        %1235 = vmatpush1.bf16.msra.mxu0 0
        %1236 = vmatprep.subr.bf16.mxu0 0
        %1237 = vmatpush1.bf16.msra.mxu0 0
        %1238 = vmatprep.subr.bf16.mxu0 0
        %1239 = vmatpush1.bf16.msra.mxu0 0
        %1240 = vmatprep.subr.bf16.mxu0 0
        %1241 = vmatpush1.bf16.msra.mxu0 0
        %1242 = vmatprep.subr.bf16.mxu0 0
        %1243 = vmatpush1.bf16.msra.mxu0 0
        %1244 = vmatprep.subr.bf16.mxu0 0
        %1245 = vmatpush1.bf16.msra.mxu0 0
        %1246 = vmatprep.subr.bf16.mxu0 0
        %1247 = vmatpush1.bf16.msra.mxu0 0
        %1248 = vmatprep.subr.bf16.mxu0 0
        %1249 = vmatpush1.bf16.msra.mxu0 0
        %1250 = vmatprep.subr.bf16.mxu0 0
        %1251 = vmatpush1.bf16.msra.mxu0 0
        %1252 = vmatprep.subr.bf16.mxu0 0
        %1253 = vmatpush1.bf16.msra.mxu0 0
        %1254 = vmatprep.subr.bf16.mxu0 0
        %1255 = vmatpush1.bf16.msra.mxu0 0
        %1256 = vmatprep.subr.bf16.mxu0 0
        %1257 = vmatpush1.bf16.msra.mxu0 0
        %1258 = vmatprep.subr.bf16.mxu0 0
        %1259 = vmatpush1.bf16.msra.mxu0 0
        %1260 = vmatprep.subr.bf16.mxu0 0
        %1261 = vmatpush1.bf16.msra.mxu0 0
        %1262 = vmatprep.subr.bf16.mxu0 0
        %1263 = vmatpush1.bf16.msra.mxu0 0
        %1264 = vmatprep.mubr.bf16.mxu0 0
        %1265 = vmatmul.mubr.bf16.gmra.mrb[0].mxu0 %v1227
        %v1266 = vpop.f32.mrb[0].mxu0
        %v1267 = vadd.f32 0.0, %v1266
        %v1268 = vpop.f32.mrb[0].mxu0
        %v1269 = vpop.f32.mrb[0].mxu0
        %v1270 = vpop.f32.mrb[0].mxu0
        %1271 = vdwg.mxu0
        %1273 = vrot.lane.b32.xlu0 %v868, 96
        %v1274 = vpop.permute.xlu0 %1273
        %v1276 = vsel %vm976, %v1222, 0
        %v1279 = vsel %vm1004, %v1274, 0
        %1281 = vmatprep.subr.bf16.mxu0 0
        %1282 = vmatpush1.bf16.msra.mxu0 %v1279
        %1283 = vmatprep.subr.bf16.mxu0 0
        %1284 = vmatpush1.bf16.msra.mxu0 0
        %1285 = vmatprep.subr.bf16.mxu0 0
        %1286 = vmatpush1.bf16.msra.mxu0 0
        %1287 = vmatprep.subr.bf16.mxu0 0
        %1288 = vmatpush1.bf16.msra.mxu0 0
        %1289 = vmatprep.subr.bf16.mxu0 0
        %1290 = vmatpush1.bf16.msra.mxu0 0
        %1291 = vmatprep.subr.bf16.mxu0 0
        %1292 = vmatpush1.bf16.msra.mxu0 0
        %1293 = vmatprep.subr.bf16.mxu0 0
        %1294 = vmatpush1.bf16.msra.mxu0 0
        %1295 = vmatprep.subr.bf16.mxu0 0
        %1296 = vmatpush1.bf16.msra.mxu0 0
        %1297 = vmatprep.subr.bf16.mxu0 0
        %1298 = vmatpush1.bf16.msra.mxu0 0
        %1299 = vmatprep.subr.bf16.mxu0 0
        %1300 = vmatpush1.bf16.msra.mxu0 0
        %1301 = vmatprep.subr.bf16.mxu0 0
        %1302 = vmatpush1.bf16.msra.mxu0 0
        %1303 = vmatprep.subr.bf16.mxu0 0
        %1304 = vmatpush1.bf16.msra.mxu0 0
        %1305 = vmatprep.subr.bf16.mxu0 0
        %1306 = vmatpush1.bf16.msra.mxu0 0
        %1307 = vmatprep.subr.bf16.mxu0 0
        %1308 = vmatpush1.bf16.msra.mxu0 0
        %1309 = vmatprep.subr.bf16.mxu0 0
        %1310 = vmatpush1.bf16.msra.mxu0 0
        %1311 = vmatprep.subr.bf16.mxu0 0
        %1312 = vmatpush1.bf16.msra.mxu0 0
        %1313 = vmatprep.mubr.bf16.mxu0 0
        %1314 = vmatmul.mubr.bf16.gmra.mrb[0].mxu0 %v1276
        %v1315 = vpop.f32.mrb[0].mxu0
        %v1316 = vadd.f32 0.0, %v1315
        %v1317 = vpop.f32.mrb[0].mxu0
        %v1318 = vpop.f32.mrb[0].mxu0
        %v1319 = vpop.f32.mrb[0].mxu0
        %1320 = vdwg.mxu0
        %v1321 = vpack.c.bf16 %v1316, %v1267
        %v1326 = vunpack.c.l.b16 %v563
        %v1327 = vunpack.c.l.b16 %v564
        %v1328 = vunpack.c.l.b16 %v565
        %v1329 = vunpack.c.l.b16 %v566
        %v1330 = vpack.c.b16 %v1327, %v1326
        %v1331 = vpack.c.b16 %v1329, %v1328
        %v1335 = vsel %vm883, %v1321, 0
        %1337 = vmatprep.subr.bf16.mxu0 0
        %1338 = vmatpush1.bf16.msra.mxu0 %v1330
        %1339 = vmatprep.subr.bf16.mxu0 0
        %1340 = vmatpush1.bf16.msra.mxu0 %v1331
        %1341 = vmatprep.subr.bf16.mxu0 0
        %1342 = vmatpush1.bf16.msra.mxu0 0
        %1343 = vmatprep.subr.bf16.mxu0 0
        %1344 = vmatpush1.bf16.msra.mxu0 0
        %1345 = vmatprep.subr.bf16.mxu0 0
        %1346 = vmatpush1.bf16.msra.mxu0 0
        %1347 = vmatprep.subr.bf16.mxu0 0
        %1348 = vmatpush1.bf16.msra.mxu0 0
        %1349 = vmatprep.subr.bf16.mxu0 0
        %1350 = vmatpush1.bf16.msra.mxu0 0
        %1351 = vmatprep.subr.bf16.mxu0 0
        %1352 = vmatpush1.bf16.msra.mxu0 0
        %1353 = vmatprep.subr.bf16.mxu0 0
        %1354 = vmatpush1.bf16.msra.mxu0 0
        %1355 = vmatprep.subr.bf16.mxu0 0
        %1356 = vmatpush1.bf16.msra.mxu0 0
        %1357 = vmatprep.subr.bf16.mxu0 0
        %1358 = vmatpush1.bf16.msra.mxu0 0
        %1359 = vmatprep.subr.bf16.mxu0 0
        %1360 = vmatpush1.bf16.msra.mxu0 0
        %1361 = vmatprep.subr.bf16.mxu0 0
        %1362 = vmatpush1.bf16.msra.mxu0 0
        %1363 = vmatprep.subr.bf16.mxu0 0
        %1364 = vmatpush1.bf16.msra.mxu0 0
        %1365 = vmatprep.subr.bf16.mxu0 0
        %1366 = vmatpush1.bf16.msra.mxu0 0
        %1367 = vmatprep.subr.bf16.mxu0 0
        %1368 = vmatpush1.bf16.msra.mxu0 0
        %1369 = vmatprep.mubr.bf16.mxu0 0
        %1370 = vmatmul.mubr.bf16.gmra.mrb[0].mxu0 %v1335
        %v1371 = vpop.f32.mrb[0].mxu0
        %v1372 = vadd.f32 0.0, %v1371
        %v1373 = vpop.f32.mrb[0].mxu0
        %v1374 = vpop.f32.mrb[0].mxu0
        %v1375 = vadd.f32 0.0, %v1374
        %v1376 = vpop.f32.mrb[0].mxu0
        %1377 = vdwg.mxu0
        %v1382 = vunpack.c.l.b16 %v559
        %v1383 = vunpack.c.l.b16 %v560
        %v1384 = vunpack.c.l.b16 %v561
        %v1385 = vunpack.c.l.b16 %v562
        %v1386 = vpack.c.b16 %v1383, %v1382
        %v1387 = vpack.c.b16 %v1385, %v1384
        %v1391 = vsel %vm883, %v1094, 0
        %1393 = vmatprep.subr.bf16.mxu0 0
        %1394 = vmatpush1.bf16.msra.mxu0 %v1386
        %1395 = vmatprep.subr.bf16.mxu0 0
        %1396 = vmatpush1.bf16.msra.mxu0 %v1387
        %1397 = vmatprep.subr.bf16.mxu0 0
        %1398 = vmatpush1.bf16.msra.mxu0 0
        %1399 = vmatprep.subr.bf16.mxu0 0
        %1400 = vmatpush1.bf16.msra.mxu0 0
        %1401 = vmatprep.subr.bf16.mxu0 0
        %1402 = vmatpush1.bf16.msra.mxu0 0
        %1403 = vmatprep.subr.bf16.mxu0 0
        %1404 = vmatpush1.bf16.msra.mxu0 0
        %1405 = vmatprep.subr.bf16.mxu0 0
        %1406 = vmatpush1.bf16.msra.mxu0 0
        %1407 = vmatprep.subr.bf16.mxu0 0
        %1408 = vmatpush1.bf16.msra.mxu0 0
        %1409 = vmatprep.subr.bf16.mxu0 0
        %1410 = vmatpush1.bf16.msra.mxu0 0
        %1411 = vmatprep.subr.bf16.mxu0 0
        %1412 = vmatpush1.bf16.msra.mxu0 0
        %1413 = vmatprep.subr.bf16.mxu0 0
        %1414 = vmatpush1.bf16.msra.mxu0 0
        %1415 = vmatprep.subr.bf16.mxu0 0
        %1416 = vmatpush1.bf16.msra.mxu0 0
        %1417 = vmatprep.subr.bf16.mxu0 0
        %1418 = vmatpush1.bf16.msra.mxu0 0
        %1419 = vmatprep.subr.bf16.mxu0 0
        %1420 = vmatpush1.bf16.msra.mxu0 0
        %1421 = vmatprep.subr.bf16.mxu0 0
        %1422 = vmatpush1.bf16.msra.mxu0 0
        %1423 = vmatprep.subr.bf16.mxu0 0
        %1424 = vmatpush1.bf16.msra.mxu0 0
        %1425 = vmatprep.mubr.bf16.mxu0 0
        %1426 = vmatmul.mubr.bf16.gmra.mrb[0].mxu0 %v1391
        %v1427 = vpop.f32.mrb[0].mxu0
        %v1428 = vadd.f32 %v1372, %v1427
        %v1429 = vpop.f32.mrb[0].mxu0
        %v1430 = vpop.f32.mrb[0].mxu0
        %v1431 = vadd.f32 %v1375, %v1430
        %v1432 = vpop.f32.mrb[0].mxu0
        %1433 = vdwg.mxu0
        %1434 = vrot.lane.b32.xlu0 %v863, 64
        %v1435 = vpop.permute.xlu0 %1434
        %1436 = vrot.lane.b32.xlu0 %v865, 64
        %v1437 = vpop.permute.xlu0 %1436
        %v1439 = vsel %vm883, %v1435, 0
        %v1442 = vsel %vm883, %v1437, 0
        %1444 = vmatprep.subr.bf16.mxu0 0
        %1445 = vmatpush1.bf16.xpose.msra.mxu0 %v1442
        %1446 = vmatprep.subr.bf16.mxu0 0
        %1447 = vmatpush1.bf16.xpose.msra.mxu0 0
        %1448 = vmatprep.subr.bf16.mxu0 0
        %1449 = vmatpush1.bf16.xpose.msra.mxu0 0
        %1450 = vmatprep.subr.bf16.mxu0 0
        %1451 = vmatpush1.bf16.xpose.msra.mxu0 0
        %1452 = vmatprep.subr.bf16.mxu0 0
        %1453 = vmatpush1.bf16.xpose.msra.mxu0 0
        %1454 = vmatprep.subr.bf16.mxu0 0
        %1455 = vmatpush1.bf16.xpose.msra.mxu0 0
        %1456 = vmatprep.subr.bf16.mxu0 0
        %1457 = vmatpush1.bf16.xpose.msra.mxu0 0
        %1458 = vmatprep.subr.bf16.mxu0 0
        %1459 = vmatpush1.bf16.xpose.msra.mxu0 0
        %1460 = vmatprep.subr.bf16.mxu0 0
        %1461 = vmatpush1.bf16.xpose.msra.mxu0 0
        %1462 = vmatprep.subr.bf16.mxu0 0
        %1463 = vmatpush1.bf16.xpose.msra.mxu0 0
        %1464 = vmatprep.subr.bf16.mxu0 0
        %1465 = vmatpush1.bf16.xpose.msra.mxu0 0
        %1466 = vmatprep.subr.bf16.mxu0 0
        %1467 = vmatpush1.bf16.xpose.msra.mxu0 0
        %1468 = vmatprep.subr.bf16.mxu0 0
        %1469 = vmatpush1.bf16.xpose.msra.mxu0 0
        %1470 = vmatprep.subr.bf16.mxu0 0
        %1471 = vmatpush1.bf16.xpose.msra.mxu0 0
        %1472 = vmatprep.subr.bf16.mxu0 0
        %1473 = vmatpush1.bf16.xpose.msra.mxu0 0
        %1474 = vmatprep.subr.bf16.mxu0 0
        %1475 = vmatpush1.bf16.xpose.msra.mxu0 0
        %1476 = vmatprep.mubr.bf16.mxu0 0
        %1477 = vmatmul.mubr.bf16.gmra.mrb[0].mxu0 %v1439
        %v1478 = vpop.f32.mrb[0].mxu0
        %v1479 = vadd.f32 %v876, %v1478
        %v1480 = vpop.f32.mrb[0].mxu0
        %v1481 = vpop.f32.mrb[0].mxu0
        %v1482 = vpop.f32.mrb[0].mxu0
        %1483 = vdwg.mxu0
        %1484 = vrot.lane.b32.xlu0 %v864, 64
        %v1485 = vpop.permute.xlu0 %1484
        %1486 = vrot.lane.b32.xlu0 %v866, 64
        %v1487 = vpop.permute.xlu0 %1486
        %v1489 = vsel %vm883, %v1485, 0
        %v1492 = vsel %vm883, %v1487, 0
        %1494 = vmatprep.subr.bf16.mxu0 0
        %1495 = vmatpush1.bf16.xpose.msra.mxu0 %v1492
        %1496 = vmatprep.subr.bf16.mxu0 0
        %1497 = vmatpush1.bf16.xpose.msra.mxu0 0
        %1498 = vmatprep.subr.bf16.mxu0 0
        %1499 = vmatpush1.bf16.xpose.msra.mxu0 0
        %1500 = vmatprep.subr.bf16.mxu0 0
        %1501 = vmatpush1.bf16.xpose.msra.mxu0 0
        %1502 = vmatprep.subr.bf16.mxu0 0
        %1503 = vmatpush1.bf16.xpose.msra.mxu0 0
        %1504 = vmatprep.subr.bf16.mxu0 0
        %1505 = vmatpush1.bf16.xpose.msra.mxu0 0
        %1506 = vmatprep.subr.bf16.mxu0 0
        %1507 = vmatpush1.bf16.xpose.msra.mxu0 0
        %1508 = vmatprep.subr.bf16.mxu0 0
        %1509 = vmatpush1.bf16.xpose.msra.mxu0 0
        %1510 = vmatprep.subr.bf16.mxu0 0
        %1511 = vmatpush1.bf16.xpose.msra.mxu0 0
        %1512 = vmatprep.subr.bf16.mxu0 0
        %1513 = vmatpush1.bf16.xpose.msra.mxu0 0
        %1514 = vmatprep.subr.bf16.mxu0 0
        %1515 = vmatpush1.bf16.xpose.msra.mxu0 0
        %1516 = vmatprep.subr.bf16.mxu0 0
        %1517 = vmatpush1.bf16.xpose.msra.mxu0 0
        %1518 = vmatprep.subr.bf16.mxu0 0
        %1519 = vmatpush1.bf16.xpose.msra.mxu0 0
        %1520 = vmatprep.subr.bf16.mxu0 0
        %1521 = vmatpush1.bf16.xpose.msra.mxu0 0
        %1522 = vmatprep.subr.bf16.mxu0 0
        %1523 = vmatpush1.bf16.xpose.msra.mxu0 0
        %1524 = vmatprep.subr.bf16.mxu0 0
        %1525 = vmatpush1.bf16.xpose.msra.mxu0 0
        %1526 = vmatprep.mubr.bf16.mxu0 0
        %1527 = vmatmul.mubr.bf16.gmra.mrb[0].mxu0 %v1489
        %v1528 = vpop.f32.mrb[0].mxu0
        %v1529 = vadd.f32 %v880, %v1528
        %v1530 = vpop.f32.mrb[0].mxu0
        %v1531 = vpop.f32.mrb[0].mxu0
        %v1532 = vpop.f32.mrb[0].mxu0
        %1533 = vdwg.mxu0
        %v1534 = vsel %vm976, %v1479, -inf
        %1535 = vmax.xlane.f32.xlu0 %v1534
        %v1536 = vpop.xlane.xlu0 %1535
        %v1537 = vsel %vm976, %v1529, -inf
        %1538 = vmax.xlane.f32.xlu0 %v1537
        %v1539 = vpop.xlane.xlu0 %1538
        %v1540 = vsub.f32 %v1479, %v1536
        %v1541 = vsub.f32 %v1529, %v1539
        %v1542 = vmul.f32 %v1540, 1.442695
        %v1543 = vpow.pop %v1542
        %v1544 = vmul.f32 %v1541, 1.442695
        %v1545 = vpow.pop %v1544
        %v1546 = vsel %vm976, %v1543, 0.0
        %1547 = vadd.xlane.f32.xlu0 %v1546
        %v1548 = vpop.xlane.xlu0 %1547
        %v1549 = vsel %vm976, %v1545, 0.0
        %1550 = vadd.xlane.f32.xlu0 %v1549
        %v1551 = vpop.xlane.xlu0 %1550
        %v1552 = vrcp.pop %v1548
        %v1553 = vrcp.pop %v1551
        %v1554 = vmul.f32 %v1543, %v1552
        %v1555 = vmul.f32 %v1545, %v1553
        %v1556 = vpack.c.bf16 %v1554, %v1554
        %v1557 = vpack.c.bf16 %v1555, %v1555
        %1558 = vrot.lane.b32.xlu0 %v867, 64
        %v1559 = vpop.permute.xlu0 %1558
        %v1561 = vsel %vm976, %v1556, 0
        %v1564 = vsel %vm1004, %v1559, 0
        %1566 = vmatprep.subr.bf16.mxu0 0
        %1567 = vmatpush1.bf16.msra.mxu0 %v1564
        %1568 = vmatprep.subr.bf16.mxu0 0
        %1569 = vmatpush1.bf16.msra.mxu0 0
        %1570 = vmatprep.subr.bf16.mxu0 0
        %1571 = vmatpush1.bf16.msra.mxu0 0
        %1572 = vmatprep.subr.bf16.mxu0 0
        %1573 = vmatpush1.bf16.msra.mxu0 0
        %1574 = vmatprep.subr.bf16.mxu0 0
        %1575 = vmatpush1.bf16.msra.mxu0 0
        %1576 = vmatprep.subr.bf16.mxu0 0
        %1577 = vmatpush1.bf16.msra.mxu0 0
        %1578 = vmatprep.subr.bf16.mxu0 0
        %1579 = vmatpush1.bf16.msra.mxu0 0
        %1580 = vmatprep.subr.bf16.mxu0 0
        %1581 = vmatpush1.bf16.msra.mxu0 0
        %1582 = vmatprep.subr.bf16.mxu0 0
        %1583 = vmatpush1.bf16.msra.mxu0 0
        %1584 = vmatprep.subr.bf16.mxu0 0
        %1585 = vmatpush1.bf16.msra.mxu0 0
        %1586 = vmatprep.subr.bf16.mxu0 0
        %1587 = vmatpush1.bf16.msra.mxu0 0
        %1588 = vmatprep.subr.bf16.mxu0 0
        %1589 = vmatpush1.bf16.msra.mxu0 0
        %1590 = vmatprep.subr.bf16.mxu0 0
        %1591 = vmatpush1.bf16.msra.mxu0 0
        %1592 = vmatprep.subr.bf16.mxu0 0
        %1593 = vmatpush1.bf16.msra.mxu0 0
        %1594 = vmatprep.subr.bf16.mxu0 0
        %1595 = vmatpush1.bf16.msra.mxu0 0
        %1596 = vmatprep.subr.bf16.mxu0 0
        %1597 = vmatpush1.bf16.msra.mxu0 0
        %1598 = vmatprep.mubr.bf16.mxu0 0
        %1599 = vmatmul.mubr.bf16.gmra.mrb[0].mxu0 %v1561
        %v1600 = vpop.f32.mrb[0].mxu0
        %v1601 = vadd.f32 0.0, %v1600
        %v1602 = vpop.f32.mrb[0].mxu0
        %v1603 = vpop.f32.mrb[0].mxu0
        %v1604 = vpop.f32.mrb[0].mxu0
        %1605 = vdwg.mxu0
        %1606 = vrot.lane.b32.xlu0 %v868, 64
        %v1607 = vpop.permute.xlu0 %1606
        %v1609 = vsel %vm976, %v1557, 0
        %v1612 = vsel %vm1004, %v1607, 0
        %1614 = vmatprep.subr.bf16.mxu0 0
        %1615 = vmatpush1.bf16.msra.mxu0 %v1612
        %1616 = vmatprep.subr.bf16.mxu0 0
        %1617 = vmatpush1.bf16.msra.mxu0 0
        %1618 = vmatprep.subr.bf16.mxu0 0
        %1619 = vmatpush1.bf16.msra.mxu0 0
        %1620 = vmatprep.subr.bf16.mxu0 0
        %1621 = vmatpush1.bf16.msra.mxu0 0
        %1622 = vmatprep.subr.bf16.mxu0 0
        %1623 = vmatpush1.bf16.msra.mxu0 0
        %1624 = vmatprep.subr.bf16.mxu0 0
        %1625 = vmatpush1.bf16.msra.mxu0 0
        %1626 = vmatprep.subr.bf16.mxu0 0
        %1627 = vmatpush1.bf16.msra.mxu0 0
        %1628 = vmatprep.subr.bf16.mxu0 0
        %1629 = vmatpush1.bf16.msra.mxu0 0
        %1630 = vmatprep.subr.bf16.mxu0 0
        %1631 = vmatpush1.bf16.msra.mxu0 0
        %1632 = vmatprep.subr.bf16.mxu0 0
        %1633 = vmatpush1.bf16.msra.mxu0 0
        %1634 = vmatprep.subr.bf16.mxu0 0
        %1635 = vmatpush1.bf16.msra.mxu0 0
        %1636 = vmatprep.subr.bf16.mxu0 0
        %1637 = vmatpush1.bf16.msra.mxu0 0
        %1638 = vmatprep.subr.bf16.mxu0 0
        %1639 = vmatpush1.bf16.msra.mxu0 0
        %1640 = vmatprep.subr.bf16.mxu0 0
        %1641 = vmatpush1.bf16.msra.mxu0 0
        %1642 = vmatprep.subr.bf16.mxu0 0
        %1643 = vmatpush1.bf16.msra.mxu0 0
        %1644 = vmatprep.subr.bf16.mxu0 0
        %1645 = vmatpush1.bf16.msra.mxu0 0
        %1646 = vmatprep.mubr.bf16.mxu0 0
        %1647 = vmatmul.mubr.bf16.gmra.mrb[0].mxu0 %v1609
        %v1648 = vpop.f32.mrb[0].mxu0
        %v1649 = vadd.f32 0.0, %v1648
        %v1650 = vpop.f32.mrb[0].mxu0
        %v1651 = vpop.f32.mrb[0].mxu0
        %v1652 = vpop.f32.mrb[0].mxu0
        %1653 = vdwg.mxu0
        %v1654 = vpack.c.bf16 %v1649, %v1601
        %v1659 = vunpack.c.l.b16 %v567
        %v1660 = vunpack.c.l.b16 %v568
        %v1661 = vunpack.c.l.b16 %v569
        %v1662 = vunpack.c.l.b16 %v570
        %v1663 = vpack.c.b16 %v1660, %v1659
        %v1664 = vpack.c.b16 %v1662, %v1661
        %v1668 = vsel %vm883, %v1654, 0
        %1670 = vmatprep.subr.bf16.mxu0 0
        %1671 = vmatpush1.bf16.msra.mxu0 %v1663
        %1672 = vmatprep.subr.bf16.mxu0 0
        %1673 = vmatpush1.bf16.msra.mxu0 %v1664
        %1674 = vmatprep.subr.bf16.mxu0 0
        %1675 = vmatpush1.bf16.msra.mxu0 0
        %1676 = vmatprep.subr.bf16.mxu0 0
        %1677 = vmatpush1.bf16.msra.mxu0 0
        %1678 = vmatprep.subr.bf16.mxu0 0
        %1679 = vmatpush1.bf16.msra.mxu0 0
        %1680 = vmatprep.subr.bf16.mxu0 0
        %1681 = vmatpush1.bf16.msra.mxu0 0
        %1682 = vmatprep.subr.bf16.mxu0 0
        %1683 = vmatpush1.bf16.msra.mxu0 0
        %1684 = vmatprep.subr.bf16.mxu0 0
        %1685 = vmatpush1.bf16.msra.mxu0 0
        %1686 = vmatprep.subr.bf16.mxu0 0
        %1687 = vmatpush1.bf16.msra.mxu0 0
        %1688 = vmatprep.subr.bf16.mxu0 0
        %1689 = vmatpush1.bf16.msra.mxu0 0
        %1690 = vmatprep.subr.bf16.mxu0 0
        %1691 = vmatpush1.bf16.msra.mxu0 0
        %1692 = vmatprep.subr.bf16.mxu0 0
        %1693 = vmatpush1.bf16.msra.mxu0 0
        %1694 = vmatprep.subr.bf16.mxu0 0
        %1695 = vmatpush1.bf16.msra.mxu0 0
        %1696 = vmatprep.subr.bf16.mxu0 0
        %1697 = vmatpush1.bf16.msra.mxu0 0
        %1698 = vmatprep.subr.bf16.mxu0 0
        %1699 = vmatpush1.bf16.msra.mxu0 0
        %1700 = vmatprep.subr.bf16.mxu0 0
        %1701 = vmatpush1.bf16.msra.mxu0 0
        %1702 = vmatprep.mubr.bf16.mxu0 0
        %1703 = vmatmul.mubr.bf16.gmra.mrb[0].mxu0 %v1668
        %v1704 = vpop.f32.mrb[0].mxu0
        %v1705 = vadd.f32 0.0, %v1704
        %v1706 = vpop.f32.mrb[0].mxu0
        %v1707 = vpop.f32.mrb[0].mxu0
        %v1708 = vadd.f32 0.0, %v1707
        %v1709 = vpop.f32.mrb[0].mxu0
        %1710 = vdwg.mxu0
        %v1711 = vadd.f32 %v1428, %v1705
        %v1712 = vadd.f32 %v1431, %v1708
        %1713 = vrot.lane.b32.xlu0 %v863, 32
        %v1714 = vpop.permute.xlu0 %1713
        %1715 = vrot.lane.b32.xlu0 %v865, 32
        %v1716 = vpop.permute.xlu0 %1715
        %v1718 = vsel %vm883, %v1714, 0
        %v1721 = vsel %vm883, %v1716, 0
        %1723 = vmatprep.subr.bf16.mxu0 0
        %1724 = vmatpush1.bf16.xpose.msra.mxu0 %v1721
        %1725 = vmatprep.subr.bf16.mxu0 0
        %1726 = vmatpush1.bf16.xpose.msra.mxu0 0
        %1727 = vmatprep.subr.bf16.mxu0 0
        %1728 = vmatpush1.bf16.xpose.msra.mxu0 0
        %1729 = vmatprep.subr.bf16.mxu0 0
        %1730 = vmatpush1.bf16.xpose.msra.mxu0 0
        %1731 = vmatprep.subr.bf16.mxu0 0
        %1732 = vmatpush1.bf16.xpose.msra.mxu0 0
        %1733 = vmatprep.subr.bf16.mxu0 0
        %1734 = vmatpush1.bf16.xpose.msra.mxu0 0
        %1735 = vmatprep.subr.bf16.mxu0 0
        %1736 = vmatpush1.bf16.xpose.msra.mxu0 0
        %1737 = vmatprep.subr.bf16.mxu0 0
        %1738 = vmatpush1.bf16.xpose.msra.mxu0 0
        %1739 = vmatprep.subr.bf16.mxu0 0
        %1740 = vmatpush1.bf16.xpose.msra.mxu0 0
        %1741 = vmatprep.subr.bf16.mxu0 0
        %1742 = vmatpush1.bf16.xpose.msra.mxu0 0
        %1743 = vmatprep.subr.bf16.mxu0 0
        %1744 = vmatpush1.bf16.xpose.msra.mxu0 0
        %1745 = vmatprep.subr.bf16.mxu0 0
        %1746 = vmatpush1.bf16.xpose.msra.mxu0 0
        %1747 = vmatprep.subr.bf16.mxu0 0
        %1748 = vmatpush1.bf16.xpose.msra.mxu0 0
        %1749 = vmatprep.subr.bf16.mxu0 0
        %1750 = vmatpush1.bf16.xpose.msra.mxu0 0
        %1751 = vmatprep.subr.bf16.mxu0 0
        %1752 = vmatpush1.bf16.xpose.msra.mxu0 0
        %1753 = vmatprep.subr.bf16.mxu0 0
        %1754 = vmatpush1.bf16.xpose.msra.mxu0 0
        %1755 = vmatprep.mubr.bf16.mxu0 0
        %1756 = vmatmul.mubr.bf16.gmra.mrb[0].mxu0 %v1718
        %v1757 = vpop.f32.mrb[0].mxu0
        %v1758 = vadd.f32 %v876, %v1757
        %v1759 = vpop.f32.mrb[0].mxu0
        %v1760 = vpop.f32.mrb[0].mxu0
        %v1761 = vpop.f32.mrb[0].mxu0
        %1762 = vdwg.mxu0
        %1763 = vrot.lane.b32.xlu0 %v864, 32
        %v1764 = vpop.permute.xlu0 %1763
        %1765 = vrot.lane.b32.xlu0 %v866, 32
        %v1766 = vpop.permute.xlu0 %1765
        %v1768 = vsel %vm883, %v1764, 0
        %v1771 = vsel %vm883, %v1766, 0
        %1773 = vmatprep.subr.bf16.mxu0 0
        %1774 = vmatpush1.bf16.xpose.msra.mxu0 %v1771
        %1775 = vmatprep.subr.bf16.mxu0 0
        %1776 = vmatpush1.bf16.xpose.msra.mxu0 0
        %1777 = vmatprep.subr.bf16.mxu0 0
        %1778 = vmatpush1.bf16.xpose.msra.mxu0 0
        %1779 = vmatprep.subr.bf16.mxu0 0
        %1780 = vmatpush1.bf16.xpose.msra.mxu0 0
        %1781 = vmatprep.subr.bf16.mxu0 0
        %1782 = vmatpush1.bf16.xpose.msra.mxu0 0
        %1783 = vmatprep.subr.bf16.mxu0 0
        %1784 = vmatpush1.bf16.xpose.msra.mxu0 0
        %1785 = vmatprep.subr.bf16.mxu0 0
        %1786 = vmatpush1.bf16.xpose.msra.mxu0 0
        %1787 = vmatprep.subr.bf16.mxu0 0
        %1788 = vmatpush1.bf16.xpose.msra.mxu0 0
        %1789 = vmatprep.subr.bf16.mxu0 0
        %1790 = vmatpush1.bf16.xpose.msra.mxu0 0
        %1791 = vmatprep.subr.bf16.mxu0 0
        %1792 = vmatpush1.bf16.xpose.msra.mxu0 0
        %1793 = vmatprep.subr.bf16.mxu0 0
        %1794 = vmatpush1.bf16.xpose.msra.mxu0 0
        %1795 = vmatprep.subr.bf16.mxu0 0
        %1796 = vmatpush1.bf16.xpose.msra.mxu0 0
        %1797 = vmatprep.subr.bf16.mxu0 0
        %1798 = vmatpush1.bf16.xpose.msra.mxu0 0
        %1799 = vmatprep.subr.bf16.mxu0 0
        %1800 = vmatpush1.bf16.xpose.msra.mxu0 0
        %1801 = vmatprep.subr.bf16.mxu0 0
        %1802 = vmatpush1.bf16.xpose.msra.mxu0 0
        %1803 = vmatprep.subr.bf16.mxu0 0
        %1804 = vmatpush1.bf16.xpose.msra.mxu0 0
        %1805 = vmatprep.mubr.bf16.mxu0 0
        %1806 = vmatmul.mubr.bf16.gmra.mrb[0].mxu0 %v1768
        %v1807 = vpop.f32.mrb[0].mxu0
        %v1808 = vadd.f32 %v880, %v1807
        %v1809 = vpop.f32.mrb[0].mxu0
        %v1810 = vpop.f32.mrb[0].mxu0
        %v1811 = vpop.f32.mrb[0].mxu0
        %1812 = vdwg.mxu0
        %v1813 = vsel %vm976, %v1758, -inf
        %1814 = vmax.xlane.f32.xlu0 %v1813
        %v1815 = vpop.xlane.xlu0 %1814
        %v1816 = vsel %vm976, %v1808, -inf
        %1817 = vmax.xlane.f32.xlu0 %v1816
        %v1818 = vpop.xlane.xlu0 %1817
        %v1819 = vsub.f32 %v1758, %v1815
        %v1820 = vsub.f32 %v1808, %v1818
        %v1821 = vmul.f32 %v1819, 1.442695
        %v1822 = vpow.pop %v1821
        %v1823 = vmul.f32 %v1820, 1.442695
        %v1824 = vpow.pop %v1823
        %v1825 = vsel %vm976, %v1822, 0.0
        %1826 = vadd.xlane.f32.xlu0 %v1825
        %v1827 = vpop.xlane.xlu0 %1826
        %v1828 = vsel %vm976, %v1824, 0.0
        %1829 = vadd.xlane.f32.xlu0 %v1828
        %v1830 = vpop.xlane.xlu0 %1829
        %v1831 = vrcp.pop %v1827
        %v1832 = vrcp.pop %v1830
        %v1833 = vmul.f32 %v1822, %v1831
        %v1834 = vmul.f32 %v1824, %v1832
        %v1835 = vpack.c.bf16 %v1833, %v1833
        %v1836 = vpack.c.bf16 %v1834, %v1834
        %1837 = vrot.lane.b32.xlu0 %v867, 32
        %v1838 = vpop.permute.xlu0 %1837
        %v1840 = vsel %vm976, %v1835, 0
        %v1843 = vsel %vm1004, %v1838, 0
        %1845 = vmatprep.subr.bf16.mxu0 0
        %1846 = vmatpush1.bf16.msra.mxu0 %v1843
        %1847 = vmatprep.subr.bf16.mxu0 0
        %1848 = vmatpush1.bf16.msra.mxu0 0
        %1849 = vmatprep.subr.bf16.mxu0 0
        %1850 = vmatpush1.bf16.msra.mxu0 0
        %1851 = vmatprep.subr.bf16.mxu0 0
        %1852 = vmatpush1.bf16.msra.mxu0 0
        %1853 = vmatprep.subr.bf16.mxu0 0
        %1854 = vmatpush1.bf16.msra.mxu0 0
        %1855 = vmatprep.subr.bf16.mxu0 0
        %1856 = vmatpush1.bf16.msra.mxu0 0
        %1857 = vmatprep.subr.bf16.mxu0 0
        %1858 = vmatpush1.bf16.msra.mxu0 0
        %1859 = vmatprep.subr.bf16.mxu0 0
        %1860 = vmatpush1.bf16.msra.mxu0 0
        %1861 = vmatprep.subr.bf16.mxu0 0
        %1862 = vmatpush1.bf16.msra.mxu0 0
        %1863 = vmatprep.subr.bf16.mxu0 0
        %1864 = vmatpush1.bf16.msra.mxu0 0
        %1865 = vmatprep.subr.bf16.mxu0 0
        %1866 = vmatpush1.bf16.msra.mxu0 0
        %1867 = vmatprep.subr.bf16.mxu0 0
        %1868 = vmatpush1.bf16.msra.mxu0 0
        %1869 = vmatprep.subr.bf16.mxu0 0
        %1870 = vmatpush1.bf16.msra.mxu0 0
        %1871 = vmatprep.subr.bf16.mxu0 0
        %1872 = vmatpush1.bf16.msra.mxu0 0
        %1873 = vmatprep.subr.bf16.mxu0 0
        %1874 = vmatpush1.bf16.msra.mxu0 0
        %1875 = vmatprep.subr.bf16.mxu0 0
        %1876 = vmatpush1.bf16.msra.mxu0 0
        %1877 = vmatprep.mubr.bf16.mxu0 0
        %1878 = vmatmul.mubr.bf16.gmra.mrb[0].mxu0 %v1840
        %v1879 = vpop.f32.mrb[0].mxu0
        %v1880 = vadd.f32 0.0, %v1879
        %v1881 = vpop.f32.mrb[0].mxu0
        %v1882 = vpop.f32.mrb[0].mxu0
        %v1883 = vpop.f32.mrb[0].mxu0
        %1884 = vdwg.mxu0
        %1885 = vrot.lane.b32.xlu0 %v868, 32
        %v1886 = vpop.permute.xlu0 %1885
        %v1888 = vsel %vm976, %v1836, 0
        %v1891 = vsel %vm1004, %v1886, 0
        %1893 = vmatprep.subr.bf16.mxu0 0
        %1894 = vmatpush1.bf16.msra.mxu0 %v1891
        %1895 = vmatprep.subr.bf16.mxu0 0
        %1896 = vmatpush1.bf16.msra.mxu0 0
        %1897 = vmatprep.subr.bf16.mxu0 0
        %1898 = vmatpush1.bf16.msra.mxu0 0
        %1899 = vmatprep.subr.bf16.mxu0 0
        %1900 = vmatpush1.bf16.msra.mxu0 0
        %1901 = vmatprep.subr.bf16.mxu0 0
        %1902 = vmatpush1.bf16.msra.mxu0 0
        %1903 = vmatprep.subr.bf16.mxu0 0
        %1904 = vmatpush1.bf16.msra.mxu0 0
        %1905 = vmatprep.subr.bf16.mxu0 0
        %1906 = vmatpush1.bf16.msra.mxu0 0
        %1907 = vmatprep.subr.bf16.mxu0 0
        %1908 = vmatpush1.bf16.msra.mxu0 0
        %1909 = vmatprep.subr.bf16.mxu0 0
        %1910 = vmatpush1.bf16.msra.mxu0 0
        %1911 = vmatprep.subr.bf16.mxu0 0
        %1912 = vmatpush1.bf16.msra.mxu0 0
        %1913 = vmatprep.subr.bf16.mxu0 0
        %1914 = vmatpush1.bf16.msra.mxu0 0
        %1915 = vmatprep.subr.bf16.mxu0 0
        %1916 = vmatpush1.bf16.msra.mxu0 0
        %1917 = vmatprep.subr.bf16.mxu0 0
        %1918 = vmatpush1.bf16.msra.mxu0 0
        %1919 = vmatprep.subr.bf16.mxu0 0
        %1920 = vmatpush1.bf16.msra.mxu0 0
        %1921 = vmatprep.subr.bf16.mxu0 0
        %1922 = vmatpush1.bf16.msra.mxu0 0
        %1923 = vmatprep.subr.bf16.mxu0 0
        %1924 = vmatpush1.bf16.msra.mxu0 0
        %1925 = vmatprep.mubr.bf16.mxu0 0
        %1926 = vmatmul.mubr.bf16.gmra.mrb[0].mxu0 %v1888
        %v1927 = vpop.f32.mrb[0].mxu0
        %v1928 = vadd.f32 0.0, %v1927
        %v1929 = vpop.f32.mrb[0].mxu0
        %v1930 = vpop.f32.mrb[0].mxu0
        %v1931 = vpop.f32.mrb[0].mxu0
        %1932 = vdwg.mxu0
        %v1933 = vpack.c.bf16 %v1928, %v1880
        %v1938 = vunpack.c.l.b16 %v571
        %v1939 = vunpack.c.l.b16 %v572
        %v1940 = vunpack.c.l.b16 %v573
        %v1941 = vunpack.c.l.b16 %v574
        %v1942 = vpack.c.b16 %v1939, %v1938
        %v1943 = vpack.c.b16 %v1941, %v1940
        %v1947 = vsel %vm883, %v1933, 0
        %1949 = vmatprep.subr.bf16.mxu0 0
        %1950 = vmatpush1.bf16.msra.mxu0 %v1942
        %1951 = vmatprep.subr.bf16.mxu0 0
        %1952 = vmatpush1.bf16.msra.mxu0 %v1943
        %1953 = vmatprep.subr.bf16.mxu0 0
        %1954 = vmatpush1.bf16.msra.mxu0 0
        %1955 = vmatprep.subr.bf16.mxu0 0
        %1956 = vmatpush1.bf16.msra.mxu0 0
        %1957 = vmatprep.subr.bf16.mxu0 0
        %1958 = vmatpush1.bf16.msra.mxu0 0
        %1959 = vmatprep.subr.bf16.mxu0 0
        %1960 = vmatpush1.bf16.msra.mxu0 0
        %1961 = vmatprep.subr.bf16.mxu0 0
        %1962 = vmatpush1.bf16.msra.mxu0 0
        %1963 = vmatprep.subr.bf16.mxu0 0
        %1964 = vmatpush1.bf16.msra.mxu0 0
        %1965 = vmatprep.subr.bf16.mxu0 0
        %1966 = vmatpush1.bf16.msra.mxu0 0
        %1967 = vmatprep.subr.bf16.mxu0 0
        %1968 = vmatpush1.bf16.msra.mxu0 0
        %1969 = vmatprep.subr.bf16.mxu0 0
        %1970 = vmatpush1.bf16.msra.mxu0 0
        %1971 = vmatprep.subr.bf16.mxu0 0
        %1972 = vmatpush1.bf16.msra.mxu0 0
        %1973 = vmatprep.subr.bf16.mxu0 0
        %1974 = vmatpush1.bf16.msra.mxu0 0
        %1975 = vmatprep.subr.bf16.mxu0 0
        %1976 = vmatpush1.bf16.msra.mxu0 0
        %1977 = vmatprep.subr.bf16.mxu0 0
        %1978 = vmatpush1.bf16.msra.mxu0 0
        %1979 = vmatprep.subr.bf16.mxu0 0
        %1980 = vmatpush1.bf16.msra.mxu0 0
        %1981 = vmatprep.mubr.bf16.mxu0 0
        %1982 = vmatmul.mubr.bf16.gmra.mrb[0].mxu0 %v1947
        %v1983 = vpop.f32.mrb[0].mxu0
        %v1984 = vadd.f32 0.0, %v1983
        %v1985 = vpop.f32.mrb[0].mxu0
        %v1986 = vpop.f32.mrb[0].mxu0
        %v1987 = vadd.f32 0.0, %v1986
        %v1988 = vpop.f32.mrb[0].mxu0
        %1989 = vdwg.mxu0
        %v1990 = vadd.f32 %v1711, %v1984
        %v1991 = vadd.f32 %v1712, %v1987
        %v1992 = vlaneseq
        %v1993 = vshrl.u32 %v1992, 7
        %v1994 = vsub.s32 0, %v1993
        %v1995 = vrot.slane %v633, %v1994
        %v1996 = vadd.f32 %v1990, %v1995
        %v1997 = vadd.f32 %v1991, %v1995
        %v1998 = vadd.f32 %v516, %v1996
        %v1999 = vadd.f32 %v517, %v1997
        %2000 = vadd.xlane.f32.xlu0 %v1998
        %v2001 = vpop.xlane.xlu0 %2000
        %2002 = vadd.xlane.f32.xlu0 %v1999
        %v2003 = vpop.xlane.xlu0 %2002
        %v2004 = vrcp.pop 128.0
        %v2005 = vmul.f32 %v2001, %v2004
        %v2006 = vmul.f32 %v2003, %v2004
        %v2007 = vsub.f32 %v1998, %v2005
        %v2008 = vsub.f32 %v1999, %v2006
        %v2009 = vmul.f32 %v2007, %v2007
        %v2010 = vmul.f32 %v2008, %v2008
        %2011 = vadd.xlane.f32.xlu0 %v2009
        %v2012 = vpop.xlane.xlu0 %2011
        %2013 = vadd.xlane.f32.xlu0 %v2010
        %v2014 = vpop.xlane.xlu0 %2013
        %v2015 = vmul.f32 %v2012, %v2004
        %v2016 = vmul.f32 %v2014, %v2004
        %v2017 = vadd.f32 %v2015, 1e-05
        %v2018 = vadd.f32 %v2016, 1e-05
        %v2019 = vrsqrt.pop %v2017
        %v2020 = vrsqrt.pop %v2018
        %v2021 = vmul.f32 %v2007, %v2019
        %v2022 = vmul.f32 %v2008, %v2020
        %v2023 = vlaneseq
        %v2024 = vshrl.u32 %v2023, 7
        %v2025 = vsub.s32 1, %v2024
        %v2026 = vrot.slane %v633, %v2025
        %v2027 = vmul.f32 %v2021, %v2026
        %v2028 = vmul.f32 %v2022, %v2026
        %v2029 = vlaneseq
        %v2030 = vshrl.u32 %v2029, 7
        %v2031 = vsub.s32 2, %v2030
        %v2032 = vrot.slane %v633, %v2031
        %v2033 = vadd.f32 %v2027, %v2032
        %v2034 = vadd.f32 %v2028, %v2032
        %v2035 = vpack.c.bf16 %v2034, %v2033
        %v2037 = vlaneseq
        %v2038 = vshrl.u32 %v2037, 7
        %v2039 = vsub.s32 0, %v2038
        %v2040 = vrot.slane %v596, %v2039
        %v2041 = vlaneseq
        %v2042 = vshrl.u32 %v2041, 7
        %v2043 = vsub.s32 1, %v2042
        %v2044 = vrot.slane %v596, %v2043
        %v2063 = vunpack.c.l.b16 %v578
        %v2064 = vunpack.c.h.b16 %v578
        %v2065 = vunpack.c.l.b16 %v579
        %v2066 = vunpack.c.h.b16 %v579
        %v2067 = vunpack.c.l.b16 %v580
        %v2068 = vunpack.c.h.b16 %v580
        %v2069 = vunpack.c.l.b16 %v581
        %v2070 = vunpack.c.h.b16 %v581
        %v2071 = vunpack.c.l.b16 %v582
        %v2072 = vunpack.c.h.b16 %v582
        %v2073 = vunpack.c.l.b16 %v583
        %v2074 = vunpack.c.h.b16 %v583
        %v2075 = vunpack.c.l.b16 %v584
        %v2076 = vunpack.c.h.b16 %v584
        %v2077 = vunpack.c.l.b16 %v585
        %v2078 = vunpack.c.h.b16 %v585
        %v2079 = vunpack.c.l.b16 %v586
        %v2080 = vunpack.c.h.b16 %v586
        %v2081 = vunpack.c.l.b16 %v587
        %v2082 = vunpack.c.h.b16 %v587
        %v2083 = vunpack.c.l.b16 %v588
        %v2084 = vunpack.c.h.b16 %v588
        %v2085 = vunpack.c.l.b16 %v589
        %v2086 = vunpack.c.h.b16 %v589
        %v2087 = vunpack.c.l.b16 %v590
        %v2088 = vunpack.c.h.b16 %v590
        %v2089 = vunpack.c.l.b16 %v591
        %v2090 = vunpack.c.h.b16 %v591
        %v2091 = vunpack.c.l.b16 %v592
        %v2092 = vunpack.c.h.b16 %v592
        %v2093 = vunpack.c.l.b16 %v593
        %v2094 = vunpack.c.h.b16 %v593
        %v2095 = vpack.c.b16 %v2065, %v2063
        %v2096 = vpack.c.b16 %v2066, %v2064
        %v2097 = vpack.c.b16 %v2069, %v2067
        %v2098 = vpack.c.b16 %v2070, %v2068
        %v2099 = vpack.c.b16 %v2073, %v2071
        %v2100 = vpack.c.b16 %v2074, %v2072
        %v2101 = vpack.c.b16 %v2077, %v2075
        %v2102 = vpack.c.b16 %v2078, %v2076
        %v2103 = vpack.c.b16 %v2081, %v2079
        %v2104 = vpack.c.b16 %v2082, %v2080
        %v2105 = vpack.c.b16 %v2085, %v2083
        %v2106 = vpack.c.b16 %v2086, %v2084
        %v2107 = vpack.c.b16 %v2089, %v2087
        %v2108 = vpack.c.b16 %v2090, %v2088
        %v2109 = vpack.c.b16 %v2093, %v2091
        %v2110 = vpack.c.b16 %v2094, %v2092
        %2127 = vmatprep.subr.bf16.mxu0 %v2096
        %2128 = vmatpush1.bf16.msra.mxu0 %v2095
        %2129 = vmatprep.subr.bf16.mxu0 %v2098
        %2130 = vmatpush1.bf16.msra.mxu0 %v2097
        %2131 = vmatprep.subr.bf16.mxu0 %v2100
        %2132 = vmatpush1.bf16.msra.mxu0 %v2099
        %2133 = vmatprep.subr.bf16.mxu0 %v2102
        %2134 = vmatpush1.bf16.msra.mxu0 %v2101
        %2135 = vmatprep.subr.bf16.mxu0 %v2104
        %2136 = vmatpush1.bf16.msra.mxu0 %v2103
        %2137 = vmatprep.subr.bf16.mxu0 %v2106
        %2138 = vmatpush1.bf16.msra.mxu0 %v2105
        %2139 = vmatprep.subr.bf16.mxu0 %v2108
        %2140 = vmatpush1.bf16.msra.mxu0 %v2107
        %2141 = vmatprep.subr.bf16.mxu0 %v2110
        %2142 = vmatpush1.bf16.msra.mxu0 %v2109
        %2143 = vmatprep.subr.bf16.mxu0 0
        %2144 = vmatpush1.bf16.msra.mxu0 0
        %2145 = vmatprep.subr.bf16.mxu0 0
        %2146 = vmatpush1.bf16.msra.mxu0 0
        %2147 = vmatprep.subr.bf16.mxu0 0
        %2148 = vmatpush1.bf16.msra.mxu0 0
        %2149 = vmatprep.subr.bf16.mxu0 0
        %2150 = vmatpush1.bf16.msra.mxu0 0
        %2151 = vmatprep.subr.bf16.mxu0 0
        %2152 = vmatpush1.bf16.msra.mxu0 0
        %2153 = vmatprep.subr.bf16.mxu0 0
        %2154 = vmatpush1.bf16.msra.mxu0 0
        %2155 = vmatprep.subr.bf16.mxu0 0
        %2156 = vmatpush1.bf16.msra.mxu0 0
        %2157 = vmatprep.subr.bf16.mxu0 0
        %2158 = vmatpush1.bf16.msra.mxu0 0
        %2159 = vmatprep.mubr.bf16.mxu0 0
        %2160 = vmatmul.mubr.bf16.gmra.mrb[0].mxu0 %v2035
        %v2161 = vpop.f32.mrb[0].mxu0
        %v2162 = vadd.f32 %v2040, %v2161
        %v2163 = vpop.f32.mrb[0].mxu0
        %v2164 = vadd.f32 %v2044, %v2163
        %v2165 = vpop.f32.mrb[0].mxu0
        %v2166 = vadd.f32 %v2040, %v2165
        %v2167 = vpop.f32.mrb[0].mxu0
        %v2168 = vadd.f32 %v2044, %v2167
        %2169 = vdwg.mxu0
        %v2170 = vmax.f32 %v2162, 0.0
        %v2171 = vmax.f32 %v2164, 0.0
        %v2172 = vmax.f32 %v2166, 0.0
        %v2173 = vmax.f32 %v2168, 0.0
        %v2174 = vpack.c.bf16 %v2172, %v2170
        %v2175 = vpack.c.bf16 %v2173, %v2171
        %v2176 = vlaneseq
        %v2177 = vshrl.u32 %v2176, 7
        %v2178 = vsub.s32 3, %v2177
        %v2179 = vrot.slane %v633, %v2178
        %v2212 = vunpack.c.l.b16 %v599
        %v2213 = vunpack.c.l.b16 %v600
        %v2214 = vunpack.c.l.b16 %v601
        %v2215 = vunpack.c.l.b16 %v602
        %v2216 = vunpack.c.l.b16 %v603
        %v2217 = vunpack.c.l.b16 %v604
        %v2218 = vunpack.c.l.b16 %v605
        %v2219 = vunpack.c.l.b16 %v606
        %v2220 = vunpack.c.l.b16 %v607
        %v2221 = vunpack.c.l.b16 %v608
        %v2222 = vunpack.c.l.b16 %v609
        %v2223 = vunpack.c.l.b16 %v610
        %v2224 = vunpack.c.l.b16 %v611
        %v2225 = vunpack.c.l.b16 %v612
        %v2226 = vunpack.c.l.b16 %v613
        %v2227 = vunpack.c.l.b16 %v614
        %v2228 = vunpack.c.l.b16 %v615
        %v2229 = vunpack.c.l.b16 %v616
        %v2230 = vunpack.c.l.b16 %v617
        %v2231 = vunpack.c.l.b16 %v618
        %v2232 = vunpack.c.l.b16 %v619
        %v2233 = vunpack.c.l.b16 %v620
        %v2234 = vunpack.c.l.b16 %v621
        %v2235 = vunpack.c.l.b16 %v622
        %v2236 = vunpack.c.l.b16 %v623
        %v2237 = vunpack.c.l.b16 %v624
        %v2238 = vunpack.c.l.b16 %v625
        %v2239 = vunpack.c.l.b16 %v626
        %v2240 = vunpack.c.l.b16 %v627
        %v2241 = vunpack.c.l.b16 %v628
        %v2242 = vunpack.c.l.b16 %v629
        %v2243 = vunpack.c.l.b16 %v630
        %v2244 = vpack.c.b16 %v2213, %v2212
        %v2245 = vpack.c.b16 %v2215, %v2214
        %v2246 = vpack.c.b16 %v2217, %v2216
        %v2247 = vpack.c.b16 %v2219, %v2218
        %v2248 = vpack.c.b16 %v2221, %v2220
        %v2249 = vpack.c.b16 %v2223, %v2222
        %v2250 = vpack.c.b16 %v2225, %v2224
        %v2251 = vpack.c.b16 %v2227, %v2226
        %v2252 = vpack.c.b16 %v2229, %v2228
        %v2253 = vpack.c.b16 %v2231, %v2230
        %v2254 = vpack.c.b16 %v2233, %v2232
        %v2255 = vpack.c.b16 %v2235, %v2234
        %v2256 = vpack.c.b16 %v2237, %v2236
        %v2257 = vpack.c.b16 %v2239, %v2238
        %v2258 = vpack.c.b16 %v2241, %v2240
        %v2259 = vpack.c.b16 %v2243, %v2242
        %2276 = vmatprep.subr.bf16.mxu0 0
        %2277 = vmatpush1.bf16.msra.mxu0 %v2244
        %2278 = vmatprep.subr.bf16.mxu0 0
        %2279 = vmatpush1.bf16.msra.mxu0 %v2245
        %2280 = vmatprep.subr.bf16.mxu0 0
        %2281 = vmatpush1.bf16.msra.mxu0 %v2246
        %2282 = vmatprep.subr.bf16.mxu0 0
        %2283 = vmatpush1.bf16.msra.mxu0 %v2247
        %2284 = vmatprep.subr.bf16.mxu0 0
        %2285 = vmatpush1.bf16.msra.mxu0 %v2248
        %2286 = vmatprep.subr.bf16.mxu0 0
        %2287 = vmatpush1.bf16.msra.mxu0 %v2249
        %2288 = vmatprep.subr.bf16.mxu0 0
        %2289 = vmatpush1.bf16.msra.mxu0 %v2250
        %2290 = vmatprep.subr.bf16.mxu0 0
        %2291 = vmatpush1.bf16.msra.mxu0 %v2251
        %2292 = vmatprep.subr.bf16.mxu0 0
        %2293 = vmatpush1.bf16.msra.mxu0 %v2252
        %2294 = vmatprep.subr.bf16.mxu0 0
        %2295 = vmatpush1.bf16.msra.mxu0 %v2253
        %2296 = vmatprep.subr.bf16.mxu0 0
        %2297 = vmatpush1.bf16.msra.mxu0 %v2254
        %2298 = vmatprep.subr.bf16.mxu0 0
        %2299 = vmatpush1.bf16.msra.mxu0 %v2255
        %2300 = vmatprep.subr.bf16.mxu0 0
        %2301 = vmatpush1.bf16.msra.mxu0 %v2256
        %2302 = vmatprep.subr.bf16.mxu0 0
        %2303 = vmatpush1.bf16.msra.mxu0 %v2257
        %2304 = vmatprep.subr.bf16.mxu0 0
        %2305 = vmatpush1.bf16.msra.mxu0 %v2258
        %2306 = vmatprep.subr.bf16.mxu0 0
        %2307 = vmatpush1.bf16.msra.mxu0 %v2259
        %2308 = vmatprep.mubr.bf16.mxu0 %v2175
        %2309 = vmatmul.mubr.bf16.gmra.mrb[0].mxu0 %v2174
        %v2310 = vpop.f32.mrb[0].mxu0
        %v2311 = vadd.f32 %v2179, %v2310
        %v2312 = vpop.f32.mrb[0].mxu0
        %v2313 = vpop.f32.mrb[0].mxu0
        %v2314 = vadd.f32 %v2179, %v2313
        %v2315 = vpop.f32.mrb[0].mxu0
        %2316 = vdwg.mxu0
        %v2317 = vadd.f32 %v2033, %v2311
        %v2318 = vadd.f32 %v2034, %v2314
        %2319 = vadd.xlane.f32.xlu0 %v2317
        %v2320 = vpop.xlane.xlu0 %2319
        %2321 = vadd.xlane.f32.xlu0 %v2318
        %v2322 = vpop.xlane.xlu0 %2321
        %v2323 = vmul.f32 %v2320, %v2004
        %v2324 = vmul.f32 %v2322, %v2004
        %v2325 = vsub.f32 %v2317, %v2323
        %v2326 = vsub.f32 %v2318, %v2324
        %v2327 = vmul.f32 %v2325, %v2325
        %v2328 = vmul.f32 %v2326, %v2326
        %2329 = vadd.xlane.f32.xlu0 %v2327
        %v2330 = vpop.xlane.xlu0 %2329
        %2331 = vadd.xlane.f32.xlu0 %v2328
        %v2332 = vpop.xlane.xlu0 %2331
        %v2333 = vmul.f32 %v2330, %v2004
        %v2334 = vmul.f32 %v2332, %v2004
        %v2335 = vadd.f32 %v2333, 1e-05
        %v2336 = vadd.f32 %v2334, 1e-05
        %v2337 = vrsqrt.pop %v2335
        %v2338 = vrsqrt.pop %v2336
        %v2339 = vmul.f32 %v2325, %v2337
        %v2340 = vmul.f32 %v2326, %v2338
        %v2341 = vlaneseq
        %v2342 = vshrl.u32 %v2341, 7
        %v2343 = vsub.s32 4, %v2342
        %v2344 = vrot.slane %v633, %v2343
        %v2345 = vmul.f32 %v2339, %v2344
        %v2346 = vmul.f32 %v2340, %v2344
        %v2347 = vlaneseq
        %v2348 = vshrl.u32 %v2347, 7
        %v2349 = vsub.s32 5, %v2348
        %v2350 = vrot.slane %v633, %v2349
        %v2351 = vadd.f32 %v2345, %v2350
        %v2352 = vadd.f32 %v2346, %v2350
        %2353 = vst [vmem:[%s503] sm:$0xff] %v2351
        %2354 = vst [vmem:[%s503 + $0x8] sm:$0xff] %v2352
        %s2355 = sand.u32 %s251, 1
        %s2356 = scalar_lea.sflag [#allocation4], %s2355
        %s2357 = sand.u32 %s251, 1
        %s2358 = smul.addr %s2357, 16
        %s2359 = scalar_lea.vmem [#allocation17], %s2358
        // Predicated region
        $region97: #{tpu_custom_call.1} parent=55 // pred_check
          %p2360 = pneg %p261
        $region98: #{tpu_custom_call.1} parent=55 // pred_check_branch
          %2362 = sbr.rel (%p2360) target = $region100
        $region99: #{tpu_custom_call.1} parent=55 // pred_region
          %s2363 = smul.u32 2, %s36
          %s2365 = ssub.s32 256, 256
          %2366 = vsyncadd %s2356, %s2365
          %s2367 = smul.addr %s2363, 128
          %s2368 = scalar_lea.hbm %s9, %s2367
          %s2369 = sshll.u32 %s2359, 4
          %s2370 = int_to_ptr.vmem [resolvable:$true] %s2369
          %2375 = dma.vmem_to_hbm [thread:$0]  %s2370, 256, %s2368, %s2356, 128, 128, 8
        $region100: #{tpu_custom_call.1} parent=55 // pred_fallthru
          _
      $region56: #{tpu_custom_call.1} parent=5 // pred_fallthru
        _
      %p2376 = scmp.le.s32.totalorder 2, %s27
      // Predicated region
      $region101: #{tpu_custom_call.1} parent=5 // pred_check
        %p2377 = pneg %p2376
      $region102: #{tpu_custom_call.1} parent=5 // pred_check_branch
        %2379 = sbr.rel (%p2377) target = $region104
      $region103: #{tpu_custom_call.1} parent=5 // pred_region
        %s2380 = ssub.s32 %s27, 2
        // Predicated region
        $region105: #{tpu_custom_call.1} parent=103 // pred_check
          %p2381 = pneg %p267
        $region106: #{tpu_custom_call.1} parent=103 // pred_check_branch
          %2383 = sbr.rel (%p2381) target = $region108
        $region107: #{tpu_custom_call.1} parent=103 // pred_region
          %s2384 = sand.u32 %s252, 1
          %s2385 = scalar_lea.sflag [#allocation4], %s2384
          %s2386 = sand.u32 %s252, 1
          %s2387 = smul.addr %s2386, 16
          %s2388 = scalar_lea.vmem [#allocation17], %s2387
          %2389 = dma.done %s2385, 256
        $region108: #{tpu_custom_call.1} parent=103 // pred_fallthru
          _
      $region104: #{tpu_custom_call.1} parent=5 // pred_fallthru
        _
    $region6: #{tpu_custom_call.1} parent=1 // loop_footer
      %s31 = sadd.s32 1, %s27
    $region7: #{tpu_custom_call.1} parent=1 // loop_footer_branch
      %26 = sbr.rel target = $region3
    $region8: #{tpu_custom_call.1} parent=1 // loop_exit
      _
    %2390 = vsyncpa [#allocation3], 1
    %s2391 = scalar_lea.sflag [#allocation3], 1
    %2392 = vsyncpa %s2391, 1
    %2393 = vsyncpa [#allocation6], 1
    %s2394 = scalar_lea.sflag [#allocation6], 1
    %2395 = vsyncpa %s2394, 1
    %2396 = vsyncpa [#allocation9], 1
    %2397 = vsyncpa [#allocation12], 1
    %2398 = vsyncpa [#allocation15], 1
    %2399 = vsyncpa [#allocation4], 1
    %s2400 = scalar_lea.sflag [#allocation4], 1
    %2401 = vsyncpa %s2400, 1

</llo_original>
